<compile_context>
chip_gen: v5e
topology: v5e:2x2
jax: 0.10.0
libtpu: 0.0.40
codegen_flags: <defaults>
</compile_context>

<pallas_src>
import functools

import jax
import jax.numpy as jnp
from jax.experimental import pallas as pl
from jax.experimental.pallas import tpu as pltpu


def _round_up(x, m):
    return ((x + m - 1) // m) * m


# --------------------------- fused forward kernel ----------------------------
def fused_relation_kernel(tok_ref,      # VMEM [S*BPk, 1] int32 (time-major stacked batch)
                          emb_wx_ref,   # VMEM [Vp, 4H] f32  = embed @ [W_ir|W_iz|W_in|0]
                          wh4_ref,      # VMEM [H, 4H] f32   = [W_hr|W_hz|0|W_hn]
                          b4_ref,       # VMEM [1, 4H] f32   = [bir+bhr|biz+bhz|bin|bhn]
                          wout_ref,     # VMEM [3H, Cp] f32  (class-padded)
                          bout_ref,     # VMEM [1, Cp] f32   (padded cols = -1e30)
                          score_ref,    # VMEM [P, Cp] f32   (out, lane-dense slab)
                          pred_ref):    # VMEM [P, 1] int32  (out)
    Vp = emb_wx_ref.shape[0]
    H = wh4_ref.shape[0]
    P, Cp = score_ref.shape          # P pairs per grid step
    BPk = 2 * P                      # stacked batch: rows [0:P]=arg1, [P:2P]=arg2
    S = tok_ref.shape[0] // BPk

    # ---- hoisted input projection: ONE compare + ONE matmul for all tokens ---
    toks = tok_ref[...]                                              # [S*BPk, 1]
    iota_v = jax.lax.broadcasted_iota(jnp.int32, (1, Vp), 1)          # [1, Vp]
    onehot = (toks == iota_v).astype(jnp.float32)                     # [S*BPk, Vp]
    gx_all = (jnp.dot(onehot, emb_wx_ref[...],
                      preferred_element_type=jnp.float32)
              + b4_ref[...])                                          # [S*BPk, 4H]

    wh4 = wh4_ref[...]

    # ---- serial GRU recurrence: per step only h @ wh4 + gate math -----------
    h = jnp.zeros((BPk, H), jnp.float32)
    for t in range(S):               # S small & static -> straight-line code
        g = gx_all[t * BPk:(t + 1) * BPk, :] + jnp.dot(
            h, wh4, preferred_element_type=jnp.float32)               # [BPk, 4H]
        # full-slab sigmoid (EUP); lanes [0:H)=r, [H:2H)=z
        sg = jax.nn.sigmoid(g)
        z = sg[:, H:2 * H]
        # align r and gh_n onto the gx_n lanes [2H:3H) with XLU rolls
        r_al = pltpu.roll(sg, shift=2 * H, axis=1)    # r    -> lanes [2H:3H)
        ghn_al = pltpu.roll(g, shift=3 * H, axis=1)   # gh_n -> lanes [2H:3H)
        n = jnp.tanh(g + r_al * ghn_al)[:, 2 * H:3 * H]
        h = (1.0 - z) * n + z * h

    # ---- classifier head (split matmul == concat([h1,h2,h1-h2]) @ W) --------
    h1 = h[0:P, :]
    h2 = h[P:BPk, :]
    w = wout_ref[...]                                                 # [3H, Cp]
    s = (jnp.dot(h1, w[0 * H:1 * H, :], preferred_element_type=jnp.float32)
         + jnp.dot(h2, w[1 * H:2 * H, :], preferred_element_type=jnp.float32)
         + jnp.dot(h1 - h2, w[2 * H:3 * H, :], preferred_element_type=jnp.float32)
         + bout_ref[...])                                             # [P, Cp]
    score_ref[...] = s

    # torch.max(score, 1): first index of the maximum (padded cols are -1e30)
    m = jnp.max(s, axis=-1, keepdims=True)
    idx = jax.lax.broadcasted_iota(jnp.int32, s.shape, 1)
    pred_ref[...] = jnp.min(jnp.where(s == m, idx, jnp.int32(Cp)),
                            axis=-1, keepdims=True)


# -------------------------- parameter preparation ----------------------------
def prepare_params(params):
    """One-time repack of PyTorch-style GRU params into the kernel layout."""
    V, E = params["embed"].shape
    H = params["w_hh"].shape[0]
    C = params["w_out"].shape[1]
    Vp = _round_up(V, 128)          # full-lane / full-MXU-K vocab padding
    Cp = _round_up(C, 128)          # lane-dense classifier output slab

    embed_p = jnp.pad(params["embed"].astype(jnp.float32),
                      ((0, Vp - V), (0, 0)))
    w_ih = params["w_ih"].astype(jnp.float32)       # [E, 3H]  (r, z, n)
    w_hh = params["w_hh"].astype(jnp.float32)       # [H, 3H]
    b_ih = params["b_ih"].reshape(1, 3 * H).astype(jnp.float32)
    b_hh = params["b_hh"].reshape(1, 3 * H).astype(jnp.float32)

    # 4H-wide lane-dense gate layout: x-part [W_ir|W_iz|W_in|0], h-part [W_hr|W_hz|0|W_hn]
    wx4 = jnp.concatenate([w_ih, jnp.zeros((E, H), jnp.float32)], axis=1)
    emb_wx = embed_p @ wx4                                            # [Vp, 4H]
    wh4 = jnp.concatenate([w_hh[:, 0:2 * H],
                           jnp.zeros((H, H), jnp.float32),
                           w_hh[:, 2 * H:3 * H]], axis=1)
    b4 = jnp.concatenate([b_ih[:, 0:2 * H] + b_hh[:, 0:2 * H],
                          b_ih[:, 2 * H:3 * H],
                          b_hh[:, 2 * H:3 * H]], axis=1)

    w_out = params["w_out"].astype(jnp.float32)                       # [3H, C]
    b_out = params["b_out"].reshape(1, C).astype(jnp.float32)
    pad_c = Cp - C
    w_out_p = jnp.pad(w_out, ((0, 0), (0, pad_c)))
    if pad_c > 0:
        # huge negative bias on padded class columns -> argmax ignores them
        b_out_p = jnp.concatenate(
            [b_out, jnp.full((1, pad_c), -1e30, jnp.float32)], axis=1)
    else:
        b_out_p = b_out

    return {"emb_wx": emb_wx, "wh4": wh4, "b4": b4,
            "w_out": w_out_p, "b_out": b_out_p}


# ------------------------------ full forward ---------------------------------
@functools.partial(jax.jit, static_argnames=("num_classes",))
def relation_classifier_forward(prep, arg1_words, arg2_words, *, num_classes):
    S, B = arg1_words.shape
    H = prep["wh4"].shape[0]
    Vp, G4 = prep["emb_wx"].shape
    Cp = prep["w_out"].shape[1]

    # ---- pair-batch chunking: parallel grid axis over chunks ----------------
    if B >= 128:
        chunk = 128
    else:
        chunk = _round_up(B, 8)       # keep stacked batch sublane-aligned
    Ppad = _round_up(B, chunk)
    n_chunks = Ppad // chunk
    BPk = 2 * chunk

    a1 = jnp.pad(arg1_words.astype(jnp.int32), ((0, 0), (0, Ppad - B)))
    a2 = jnp.pad(arg2_words.astype(jnp.int32), ((0, 0), (0, Ppad - B)))
    a1 = a1.reshape(S, n_chunks, chunk).transpose(1, 0, 2)    # [n_chunks, S, chunk]
    a2 = a2.reshape(S, n_chunks, chunk).transpose(1, 0, 2)
    # per-chunk stacked batch: cols [0:chunk]=arg1 pairs, [chunk:2chunk]=arg2 pairs
    toks = jnp.concatenate([a1, a2], axis=2)                  # [n_chunks, S, BPk]
    toks = toks.reshape(n_chunks, S * BPk, 1)                 # time-major rows

    score_pad, pred_pad = pl.pallas_call(
        fused_relation_kernel,
        out_shape=(jax.ShapeDtypeStruct((n_chunks, chunk, Cp), jnp.float32),
                   jax.ShapeDtypeStruct((n_chunks, chunk, 1), jnp.int32)),
        grid_spec=pltpu.PrefetchScalarGridSpec(
            num_scalar_prefetch=0,
            grid=(n_chunks,),
            in_specs=[
                pl.BlockSpec((None, S * BPk, 1), lambda i: (i, 0, 0)),
                pl.BlockSpec((Vp, G4), lambda i: (0, 0)),
                pl.BlockSpec((H, G4), lambda i: (0, 0)),
                pl.BlockSpec((1, G4), lambda i: (0, 0)),
                pl.BlockSpec((3 * H, Cp), lambda i: (0, 0)),
                pl.BlockSpec((1, Cp), lambda i: (0, 0)),
            ],
            out_specs=[
                pl.BlockSpec((None, chunk, Cp), lambda i: (i, 0, 0)),
                pl.BlockSpec((None, chunk, 1), lambda i: (i, 0, 0)),
            ],
        ),
        compiler_params=pltpu.CompilerParams(
            dimension_semantics=("parallel",)),
    )(toks, prep["emb_wx"], prep["wh4"], prep["b4"],
      prep["w_out"], prep["b_out"])

    score = score_pad.reshape(n_chunks * chunk, Cp)[:B, :num_classes]
    pred = pred_pad.reshape(n_chunks * chunk)[:B]
    return pred, score


# ------------------------------ pure-JAX reference ---------------------------
def _reference_forward(params, arg1_words, arg2_words):
    def gru(tokens):
        x = jnp.take(params["embed"], tokens, axis=0)       # [S, B, E]
        H = params["w_hh"].shape[0]
        h = jnp.zeros((x.shape[1], H), jnp.float32)
        for t in range(x.shape[0]):
            gx = x[t] @ params["w_ih"] + params["b_ih"]
            gh = h @ params["w_hh"] + params["b_hh"]
            r = jax.nn.sigmoid(gx[:, :H] + gh[:, :H])
            z = jax.nn.sigmoid(gx[:, H:2 * H] + gh[:, H:2 * H])
            n = jnp.tanh(gx[:, 2 * H:] + r * gh[:, 2 * H:])
            h = (1.0 - z) * n + z * h
        return h

    h1, h2 = gru(arg1_words), gru(arg2_words)
    feat = jnp.concatenate([h1, h2, h1 - h2], axis=1)
    score = feat @ params["w_out"] + params["b_out"]
    pred = jnp.argmax(score, axis=1).astype(jnp.int32)
    return pred, score


if __name__ == "__main__":
    # Small shapes consistent with the module.
    S, B = 8, 2                 # seq len, batch of relation pairs
    V, E, H, C = 50, 32, 32, 8  # vocab, embed_dim, lstm_hidden_size, num_classes

    key = jax.random.PRNGKey(0)
    ks = jax.random.split(key, 8)

    params = {
        "embed": jax.random.normal(ks[0], (V, E), jnp.float32) * 0.1,
        "w_ih":  jax.random.normal(ks[1], (E, 3 * H), jnp.float32) * 0.1,
        "w_hh":  jax.random.normal(ks[2], (H, 3 * H), jnp.float32) * 0.1,
        "b_ih":  jax.random.normal(ks[3], (1, 3 * H), jnp.float32) * 0.1,
        "b_hh":  jax.random.normal(ks[4], (1, 3 * H), jnp.float32) * 0.1,
        "w_out": jax.random.normal(ks[5], (3 * H, C), jnp.float32) * 0.1,
        "b_out": jax.random.normal(ks[6], (1, C), jnp.float32) * 0.1,
    }

    arg1_words = jax.random.randint(ks[7], (S, B), 0, V, dtype=jnp.int32)
    arg2_words = jax.random.randint(jax.random.fold_in(ks[7], 1), (S, B), 0, V,
                                    dtype=jnp.int32)

    prep = prepare_params(params)
    pred, score = relation_classifier_forward(prep, arg1_words, arg2_words,
                                              num_classes=C)
    jax.block_until_ready((pred, score))

    ref_pred, ref_score = _reference_forward(params, arg1_words, arg2_words)
    assert jnp.allclose(score, ref_score, rtol=1e-5, atol=1e-5)
    assert jnp.array_equal(pred, ref_pred)

    print("KERNEL_OK")
</pallas_src>

<mosaic_0001>
module attributes {stable_mosaic.version = 11 : i64} {
  func.func @fused_relation_kernel(%arg0: i32, %arg1: memref<1x128x1xi32, #tpu.memory_space<vmem>>, %arg2: memref<128x128xf32, #tpu.memory_space<vmem>>, %arg3: memref<32x128xf32, #tpu.memory_space<vmem>>, %arg4: memref<1x128xf32, #tpu.memory_space<vmem>>, %arg5: memref<96x128xf32, #tpu.memory_space<vmem>>, %arg6: memref<1x128xf32, #tpu.memory_space<vmem>>, %arg7: memref<1x8x128xf32, #tpu.memory_space<vmem>>, %arg8: memref<1x8x1xi32, #tpu.memory_space<vmem>>) attributes {dimension_semantics = [#tpu.dimension_semantics<parallel>], iteration_bounds = array<i64: 1>, scalar_prefetch = 0 : i64, scratch_operands = 0 : i64, tpu.core_type = #tpu.core_type<tc>, window_params = [{transform_indices = @transform_0, window_bounds = array<i64: 1, 128, 1>}, {pipeline_mode = #tpu.pipeline_mode<synchronous>, transform_indices = @transform_1, window_bounds = array<i64: 128, 128>}, {pipeline_mode = #tpu.pipeline_mode<synchronous>, transform_indices = @transform_2, window_bounds = array<i64: 32, 128>}, {pipeline_mode = #tpu.pipeline_mode<synchronous>, transform_indices = @transform_3, window_bounds = array<i64: 1, 128>}, {pipeline_mode = #tpu.pipeline_mode<synchronous>, transform_indices = @transform_4, window_bounds = array<i64: 96, 128>}, {pipeline_mode = #tpu.pipeline_mode<synchronous>, transform_indices = @transform_5, window_bounds = array<i64: 1, 128>}, {transform_indices = @transform_6, window_bounds = array<i64: 1, 8, 128>}, {transform_indices = @transform_7, window_bounds = array<i64: 1, 8, 1>}]} {
    %c0 = arith.constant 0 : index
    %c0_0 = arith.constant 0 : index
    %c0_1 = arith.constant 0 : index
    %0 = vector.load %arg1[%c0, %c0_0, %c0_1] : memref<1x128x1xi32, #tpu.memory_space<vmem>>, vector<1x128x1xi32>
    %1 = vector.shape_cast %0 : vector<1x128x1xi32> to vector<128x1xi32>
    %2 = tpu.iota {dimensions = array<i32: 1>} : vector<1x128xi32>
    %3 = vector.broadcast %1 : vector<128x1xi32> to vector<128x128xi32>
    %4 = vector.broadcast %2 : vector<1x128xi32> to vector<128x128xi32>
    %5 = arith.cmpi eq, %3, %4 : vector<128x128xi32>
    %6 = arith.extui %5 : vector<128x128xi1> to vector<128x128xi32>
    %7 = arith.sitofp %6 : vector<128x128xi32> to vector<128x128xf32>
    %c0_2 = arith.constant 0 : index
    %c0_3 = arith.constant 0 : index
    %8 = vector.load %arg2[%c0_2, %c0_3] : memref<128x128xf32, #tpu.memory_space<vmem>>, vector<128x128xf32>
    %cst = arith.constant dense<0.000000e+00> : vector<128x128xf32>
    %9 = tpu.matmul %7, %8, %cst {dimension_numbers = #tpu.dot_dimension_numbers<[1], [0], [0], [1], [0, 0, 1, 1], [], []>} : vector<128x128xf32>, vector<128x128xf32>, vector<128x128xf32> -> vector<128x128xf32>
    %c0_4 = arith.constant 0 : index
    %c0_5 = arith.constant 0 : index
    %10 = vector.load %arg4[%c0_4, %c0_5] : memref<1x128xf32, #tpu.memory_space<vmem>>, vector<1x128xf32>
    %11 = vector.broadcast %10 : vector<1x128xf32> to vector<128x128xf32>
    %12 = arith.addf %9, %11 : vector<128x128xf32>
    %c0_6 = arith.constant 0 : index
    %c0_7 = arith.constant 0 : index
    %13 = vector.load %arg3[%c0_6, %c0_7] : memref<32x128xf32, #tpu.memory_space<vmem>>, vector<32x128xf32>
    %cst_8 = arith.constant 0.000000e+00 : f32
    %14 = vector.broadcast %cst_8 : f32 to vector<16x32xf32>
    %15 = vector.extract_strided_slice %12 {offsets = [0, 0], sizes = [16, 128], strides = [1, 1]} : vector<128x128xf32> to vector<16x128xf32>
    %cst_9 = arith.constant dense<0.000000e+00> : vector<16x128xf32>
    %16 = tpu.matmul %14, %13, %cst_9 {dimension_numbers = #tpu.dot_dimension_numbers<[1], [0], [0], [1], [0, 0, 1, 1], [], []>} : vector<16x32xf32>, vector<32x128xf32>, vector<16x128xf32> -> vector<16x128xf32>
    %17 = arith.addf %15, %16 : vector<16x128xf32>
    %18 = arith.negf %17 : vector<16x128xf32>
    %19 = math.exp %18 : vector<16x128xf32>
    %cst_10 = arith.constant 1.000000e+00 : f32
    %20 = vector.broadcast %cst_10 : f32 to vector<16x128xf32>
    %21 = arith.addf %20, %19 : vector<16x128xf32>
    %22 = arith.divf %20, %21 : vector<16x128xf32>
    %23 = vector.extract_strided_slice %22 {offsets = [0, 32], sizes = [16, 32], strides = [1, 1]} : vector<16x128xf32> to vector<16x32xf32>
    %c64_i32 = arith.constant 64 : i32
    %24 = tpu.dynamic_rotate %22 by %c64_i32 dim 1 : vector<16x128xf32>, i32 -> vector<16x128xf32>
    %c96_i32 = arith.constant 96 : i32
    %25 = tpu.dynamic_rotate %17 by %c96_i32 dim 1 : vector<16x128xf32>, i32 -> vector<16x128xf32>
    %26 = arith.mulf %24, %25 : vector<16x128xf32>
    %27 = arith.addf %17, %26 : vector<16x128xf32>
    %28 = math.tanh %27 : vector<16x128xf32>
    %29 = vector.extract_strided_slice %28 {offsets = [0, 64], sizes = [16, 32], strides = [1, 1]} : vector<16x128xf32> to vector<16x32xf32>
    %cst_11 = arith.constant 1.000000e+00 : f32
    %30 = vector.broadcast %cst_11 : f32 to vector<16x32xf32>
    %31 = arith.subf %30, %23 : vector<16x32xf32>
    %32 = arith.mulf %31, %29 : vector<16x32xf32>
    %33 = arith.mulf %23, %14 : vector<16x32xf32>
    %34 = arith.addf %32, %33 : vector<16x32xf32>
    %35 = vector.extract_strided_slice %12 {offsets = [16, 0], sizes = [16, 128], strides = [1, 1]} : vector<128x128xf32> to vector<16x128xf32>
    %cst_12 = arith.constant dense<0.000000e+00> : vector<16x128xf32>
    %36 = tpu.matmul %34, %13, %cst_12 {dimension_numbers = #tpu.dot_dimension_numbers<[1], [0], [0], [1], [0, 0, 1, 1], [], []>} : vector<16x32xf32>, vector<32x128xf32>, vector<16x128xf32> -> vector<16x128xf32>
    %37 = arith.addf %35, %36 : vector<16x128xf32>
    %38 = arith.negf %37 : vector<16x128xf32>
    %39 = math.exp %38 : vector<16x128xf32>
    %cst_13 = arith.constant 1.000000e+00 : f32
    %40 = vector.broadcast %cst_13 : f32 to vector<16x128xf32>
    %41 = arith.addf %40, %39 : vector<16x128xf32>
    %42 = arith.divf %40, %41 : vector<16x128xf32>
    %43 = vector.extract_strided_slice %42 {offsets = [0, 32], sizes = [16, 32], strides = [1, 1]} : vector<16x128xf32> to vector<16x32xf32>
    %c64_i32_14 = arith.constant 64 : i32
    %44 = tpu.dynamic_rotate %42 by %c64_i32_14 dim 1 : vector<16x128xf32>, i32 -> vector<16x128xf32>
    %c96_i32_15 = arith.constant 96 : i32
    %45 = tpu.dynamic_rotate %37 by %c96_i32_15 dim 1 : vector<16x128xf32>, i32 -> vector<16x128xf32>
    %46 = arith.mulf %44, %45 : vector<16x128xf32>
    %47 = arith.addf %37, %46 : vector<16x128xf32>
    %48 = math.tanh %47 : vector<16x128xf32>
    %49 = vector.extract_strided_slice %48 {offsets = [0, 64], sizes = [16, 32], strides = [1, 1]} : vector<16x128xf32> to vector<16x32xf32>
    %cst_16 = arith.constant 1.000000e+00 : f32
    %50 = vector.broadcast %cst_16 : f32 to vector<16x32xf32>
    %51 = arith.subf %50, %43 : vector<16x32xf32>
    %52 = arith.mulf %51, %49 : vector<16x32xf32>
    %53 = arith.mulf %43, %34 : vector<16x32xf32>
    %54 = arith.addf %52, %53 : vector<16x32xf32>
    %55 = vector.extract_strided_slice %12 {offsets = [32, 0], sizes = [16, 128], strides = [1, 1]} : vector<128x128xf32> to vector<16x128xf32>
    %cst_17 = arith.constant dense<0.000000e+00> : vector<16x128xf32>
    %56 = tpu.matmul %54, %13, %cst_17 {dimension_numbers = #tpu.dot_dimension_numbers<[1], [0], [0], [1], [0, 0, 1, 1], [], []>} : vector<16x32xf32>, vector<32x128xf32>, vector<16x128xf32> -> vector<16x128xf32>
    %57 = arith.addf %55, %56 : vector<16x128xf32>
    %58 = arith.negf %57 : vector<16x128xf32>
    %59 = math.exp %58 : vector<16x128xf32>
    %cst_18 = arith.constant 1.000000e+00 : f32
    %60 = vector.broadcast %cst_18 : f32 to vector<16x128xf32>
    %61 = arith.addf %60, %59 : vector<16x128xf32>
    %62 = arith.divf %60, %61 : vector<16x128xf32>
    %63 = vector.extract_strided_slice %62 {offsets = [0, 32], sizes = [16, 32], strides = [1, 1]} : vector<16x128xf32> to vector<16x32xf32>
    %c64_i32_19 = arith.constant 64 : i32
    %64 = tpu.dynamic_rotate %62 by %c64_i32_19 dim 1 : vector<16x128xf32>, i32 -> vector<16x128xf32>
    %c96_i32_20 = arith.constant 96 : i32
    %65 = tpu.dynamic_rotate %57 by %c96_i32_20 dim 1 : vector<16x128xf32>, i32 -> vector<16x128xf32>
    %66 = arith.mulf %64, %65 : vector<16x128xf32>
    %67 = arith.addf %57, %66 : vector<16x128xf32>
    %68 = math.tanh %67 : vector<16x128xf32>
    %69 = vector.extract_strided_slice %68 {offsets = [0, 64], sizes = [16, 32], strides = [1, 1]} : vector<16x128xf32> to vector<16x32xf32>
    %cst_21 = arith.constant 1.000000e+00 : f32
    %70 = vector.broadcast %cst_21 : f32 to vector<16x32xf32>
    %71 = arith.subf %70, %63 : vector<16x32xf32>
    %72 = arith.mulf %71, %69 : vector<16x32xf32>
    %73 = arith.mulf %63, %54 : vector<16x32xf32>
    %74 = arith.addf %72, %73 : vector<16x32xf32>
    %75 = vector.extract_strided_slice %12 {offsets = [48, 0], sizes = [16, 128], strides = [1, 1]} : vector<128x128xf32> to vector<16x128xf32>
    %cst_22 = arith.constant dense<0.000000e+00> : vector<16x128xf32>
    %76 = tpu.matmul %74, %13, %cst_22 {dimension_numbers = #tpu.dot_dimension_numbers<[1], [0], [0], [1], [0, 0, 1, 1], [], []>} : vector<16x32xf32>, vector<32x128xf32>, vector<16x128xf32> -> vector<16x128xf32>
    %77 = arith.addf %75, %76 : vector<16x128xf32>
    %78 = arith.negf %77 : vector<16x128xf32>
    %79 = math.exp %78 : vector<16x128xf32>
    %cst_23 = arith.constant 1.000000e+00 : f32
    %80 = vector.broadcast %cst_23 : f32 to vector<16x128xf32>
    %81 = arith.addf %80, %79 : vector<16x128xf32>
    %82 = arith.divf %80, %81 : vector<16x128xf32>
    %83 = vector.extract_strided_slice %82 {offsets = [0, 32], sizes = [16, 32], strides = [1, 1]} : vector<16x128xf32> to vector<16x32xf32>
    %c64_i32_24 = arith.constant 64 : i32
    %84 = tpu.dynamic_rotate %82 by %c64_i32_24 dim 1 : vector<16x128xf32>, i32 -> vector<16x128xf32>
    %c96_i32_25 = arith.constant 96 : i32
    %85 = tpu.dynamic_rotate %77 by %c96_i32_25 dim 1 : vector<16x128xf32>, i32 -> vector<16x128xf32>
    %86 = arith.mulf %84, %85 : vector<16x128xf32>
    %87 = arith.addf %77, %86 : vector<16x128xf32>
    %88 = math.tanh %87 : vector<16x128xf32>
    %89 = vector.extract_strided_slice %88 {offsets = [0, 64], sizes = [16, 32], strides = [1, 1]} : vector<16x128xf32> to vector<16x32xf32>
    %cst_26 = arith.constant 1.000000e+00 : f32
    %90 = vector.broadcast %cst_26 : f32 to vector<16x32xf32>
    %91 = arith.subf %90, %83 : vector<16x32xf32>
    %92 = arith.mulf %91, %89 : vector<16x32xf32>
    %93 = arith.mulf %83, %74 : vector<16x32xf32>
    %94 = arith.addf %92, %93 : vector<16x32xf32>
    %95 = vector.extract_strided_slice %12 {offsets = [64, 0], sizes = [16, 128], strides = [1, 1]} : vector<128x128xf32> to vector<16x128xf32>
    %cst_27 = arith.constant dense<0.000000e+00> : vector<16x128xf32>
    %96 = tpu.matmul %94, %13, %cst_27 {dimension_numbers = #tpu.dot_dimension_numbers<[1], [0], [0], [1], [0, 0, 1, 1], [], []>} : vector<16x32xf32>, vector<32x128xf32>, vector<16x128xf32> -> vector<16x128xf32>
    %97 = arith.addf %95, %96 : vector<16x128xf32>
    %98 = arith.negf %97 : vector<16x128xf32>
    %99 = math.exp %98 : vector<16x128xf32>
    %cst_28 = arith.constant 1.000000e+00 : f32
    %100 = vector.broadcast %cst_28 : f32 to vector<16x128xf32>
    %101 = arith.addf %100, %99 : vector<16x128xf32>
    %102 = arith.divf %100, %101 : vector<16x128xf32>
    %103 = vector.extract_strided_slice %102 {offsets = [0, 32], sizes = [16, 32], strides = [1, 1]} : vector<16x128xf32> to vector<16x32xf32>
    %c64_i32_29 = arith.constant 64 : i32
    %104 = tpu.dynamic_rotate %102 by %c64_i32_29 dim 1 : vector<16x128xf32>, i32 -> vector<16x128xf32>
    %c96_i32_30 = arith.constant 96 : i32
    %105 = tpu.dynamic_rotate %97 by %c96_i32_30 dim 1 : vector<16x128xf32>, i32 -> vector<16x128xf32>
    %106 = arith.mulf %104, %105 : vector<16x128xf32>
    %107 = arith.addf %97, %106 : vector<16x128xf32>
    %108 = math.tanh %107 : vector<16x128xf32>
    %109 = vector.extract_strided_slice %108 {offsets = [0, 64], sizes = [16, 32], strides = [1, 1]} : vector<16x128xf32> to vector<16x32xf32>
    %cst_31 = arith.constant 1.000000e+00 : f32
    %110 = vector.broadcast %cst_31 : f32 to vector<16x32xf32>
    %111 = arith.subf %110, %103 : vector<16x32xf32>
    %112 = arith.mulf %111, %109 : vector<16x32xf32>
    %113 = arith.mulf %103, %94 : vector<16x32xf32>
    %114 = arith.addf %112, %113 : vector<16x32xf32>
    %115 = vector.extract_strided_slice %12 {offsets = [80, 0], sizes = [16, 128], strides = [1, 1]} : vector<128x128xf32> to vector<16x128xf32>
    %cst_32 = arith.constant dense<0.000000e+00> : vector<16x128xf32>
    %116 = tpu.matmul %114, %13, %cst_32 {dimension_numbers = #tpu.dot_dimension_numbers<[1], [0], [0], [1], [0, 0, 1, 1], [], []>} : vector<16x32xf32>, vector<32x128xf32>, vector<16x128xf32> -> vector<16x128xf32>
    %117 = arith.addf %115, %116 : vector<16x128xf32>
    %118 = arith.negf %117 : vector<16x128xf32>
    %119 = math.exp %118 : vector<16x128xf32>
    %cst_33 = arith.constant 1.000000e+00 : f32
    %120 = vector.broadcast %cst_33 : f32 to vector<16x128xf32>
    %121 = arith.addf %120, %119 : vector<16x128xf32>
    %122 = arith.divf %120, %121 : vector<16x128xf32>
    %123 = vector.extract_strided_slice %122 {offsets = [0, 32], sizes = [16, 32], strides = [1, 1]} : vector<16x128xf32> to vector<16x32xf32>
    %c64_i32_34 = arith.constant 64 : i32
    %124 = tpu.dynamic_rotate %122 by %c64_i32_34 dim 1 : vector<16x128xf32>, i32 -> vector<16x128xf32>
    %c96_i32_35 = arith.constant 96 : i32
    %125 = tpu.dynamic_rotate %117 by %c96_i32_35 dim 1 : vector<16x128xf32>, i32 -> vector<16x128xf32>
    %126 = arith.mulf %124, %125 : vector<16x128xf32>
    %127 = arith.addf %117, %126 : vector<16x128xf32>
    %128 = math.tanh %127 : vector<16x128xf32>
    %129 = vector.extract_strided_slice %128 {offsets = [0, 64], sizes = [16, 32], strides = [1, 1]} : vector<16x128xf32> to vector<16x32xf32>
    %cst_36 = arith.constant 1.000000e+00 : f32
    %130 = vector.broadcast %cst_36 : f32 to vector<16x32xf32>
    %131 = arith.subf %130, %123 : vector<16x32xf32>
    %132 = arith.mulf %131, %129 : vector<16x32xf32>
    %133 = arith.mulf %123, %114 : vector<16x32xf32>
    %134 = arith.addf %132, %133 : vector<16x32xf32>
    %135 = vector.extract_strided_slice %12 {offsets = [96, 0], sizes = [16, 128], strides = [1, 1]} : vector<128x128xf32> to vector<16x128xf32>
    %cst_37 = arith.constant dense<0.000000e+00> : vector<16x128xf32>
    %136 = tpu.matmul %134, %13, %cst_37 {dimension_numbers = #tpu.dot_dimension_numbers<[1], [0], [0], [1], [0, 0, 1, 1], [], []>} : vector<16x32xf32>, vector<32x128xf32>, vector<16x128xf32> -> vector<16x128xf32>
    %137 = arith.addf %135, %136 : vector<16x128xf32>
    %138 = arith.negf %137 : vector<16x128xf32>
    %139 = math.exp %138 : vector<16x128xf32>
    %cst_38 = arith.constant 1.000000e+00 : f32
    %140 = vector.broadcast %cst_38 : f32 to vector<16x128xf32>
    %141 = arith.addf %140, %139 : vector<16x128xf32>
    %142 = arith.divf %140, %141 : vector<16x128xf32>
    %143 = vector.extract_strided_slice %142 {offsets = [0, 32], sizes = [16, 32], strides = [1, 1]} : vector<16x128xf32> to vector<16x32xf32>
    %c64_i32_39 = arith.constant 64 : i32
    %144 = tpu.dynamic_rotate %142 by %c64_i32_39 dim 1 : vector<16x128xf32>, i32 -> vector<16x128xf32>
    %c96_i32_40 = arith.constant 96 : i32
    %145 = tpu.dynamic_rotate %137 by %c96_i32_40 dim 1 : vector<16x128xf32>, i32 -> vector<16x128xf32>
    %146 = arith.mulf %144, %145 : vector<16x128xf32>
    %147 = arith.addf %137, %146 : vector<16x128xf32>
    %148 = math.tanh %147 : vector<16x128xf32>
    %149 = vector.extract_strided_slice %148 {offsets = [0, 64], sizes = [16, 32], strides = [1, 1]} : vector<16x128xf32> to vector<16x32xf32>
    %cst_41 = arith.constant 1.000000e+00 : f32
    %150 = vector.broadcast %cst_41 : f32 to vector<16x32xf32>
    %151 = arith.subf %150, %143 : vector<16x32xf32>
    %152 = arith.mulf %151, %149 : vector<16x32xf32>
    %153 = arith.mulf %143, %134 : vector<16x32xf32>
    %154 = arith.addf %152, %153 : vector<16x32xf32>
    %155 = vector.extract_strided_slice %12 {offsets = [112, 0], sizes = [16, 128], strides = [1, 1]} : vector<128x128xf32> to vector<16x128xf32>
    %cst_42 = arith.constant dense<0.000000e+00> : vector<16x128xf32>
    %156 = tpu.matmul %154, %13, %cst_42 {dimension_numbers = #tpu.dot_dimension_numbers<[1], [0], [0], [1], [0, 0, 1, 1], [], []>} : vector<16x32xf32>, vector<32x128xf32>, vector<16x128xf32> -> vector<16x128xf32>
    %157 = arith.addf %155, %156 : vector<16x128xf32>
    %158 = arith.negf %157 : vector<16x128xf32>
    %159 = math.exp %158 : vector<16x128xf32>
    %cst_43 = arith.constant 1.000000e+00 : f32
    %160 = vector.broadcast %cst_43 : f32 to vector<16x128xf32>
    %161 = arith.addf %160, %159 : vector<16x128xf32>
    %162 = arith.divf %160, %161 : vector<16x128xf32>
    %163 = vector.extract_strided_slice %162 {offsets = [0, 32], sizes = [16, 32], strides = [1, 1]} : vector<16x128xf32> to vector<16x32xf32>
    %c64_i32_44 = arith.constant 64 : i32
    %164 = tpu.dynamic_rotate %162 by %c64_i32_44 dim 1 : vector<16x128xf32>, i32 -> vector<16x128xf32>
    %c96_i32_45 = arith.constant 96 : i32
    %165 = tpu.dynamic_rotate %157 by %c96_i32_45 dim 1 : vector<16x128xf32>, i32 -> vector<16x128xf32>
    %166 = arith.mulf %164, %165 : vector<16x128xf32>
    %167 = arith.addf %157, %166 : vector<16x128xf32>
    %168 = math.tanh %167 : vector<16x128xf32>
    %169 = vector.extract_strided_slice %168 {offsets = [0, 64], sizes = [16, 32], strides = [1, 1]} : vector<16x128xf32> to vector<16x32xf32>
    %cst_46 = arith.constant 1.000000e+00 : f32
    %170 = vector.broadcast %cst_46 : f32 to vector<16x32xf32>
    %171 = arith.subf %170, %163 : vector<16x32xf32>
    %172 = arith.mulf %171, %169 : vector<16x32xf32>
    %173 = arith.mulf %163, %154 : vector<16x32xf32>
    %174 = arith.addf %172, %173 : vector<16x32xf32>
    %175 = vector.extract_strided_slice %174 {offsets = [0, 0], sizes = [8, 32], strides = [1, 1]} : vector<16x32xf32> to vector<8x32xf32>
    %176 = vector.extract_strided_slice %174 {offsets = [8, 0], sizes = [8, 32], strides = [1, 1]} : vector<16x32xf32> to vector<8x32xf32>
    %c0_47 = arith.constant 0 : index
    %c0_48 = arith.constant 0 : index
    %177 = vector.load %arg5[%c0_47, %c0_48] : memref<96x128xf32, #tpu.memory_space<vmem>>, vector<96x128xf32>
    %178 = vector.extract_strided_slice %177 {offsets = [0, 0], sizes = [32, 128], strides = [1, 1]} : vector<96x128xf32> to vector<32x128xf32>
    %cst_49 = arith.constant dense<0.000000e+00> : vector<8x128xf32>
    %179 = tpu.matmul %175, %178, %cst_49 {dimension_numbers = #tpu.dot_dimension_numbers<[1], [0], [0], [1], [0, 0, 1, 1], [], []>} : vector<8x32xf32>, vector<32x128xf32>, vector<8x128xf32> -> vector<8x128xf32>
    %180 = vector.extract_strided_slice %177 {offsets = [32, 0], sizes = [32, 128], strides = [1, 1]} : vector<96x128xf32> to vector<32x128xf32>
    %cst_50 = arith.constant dense<0.000000e+00> : vector<8x128xf32>
    %181 = tpu.matmul %176, %180, %cst_50 {dimension_numbers = #tpu.dot_dimension_numbers<[1], [0], [0], [1], [0, 0, 1, 1], [], []>} : vector<8x32xf32>, vector<32x128xf32>, vector<8x128xf32> -> vector<8x128xf32>
    %182 = arith.addf %179, %181 : vector<8x128xf32>
    %183 = arith.subf %175, %176 : vector<8x32xf32>
    %184 = vector.extract_strided_slice %177 {offsets = [64, 0], sizes = [32, 128], strides = [1, 1]} : vector<96x128xf32> to vector<32x128xf32>
    %cst_51 = arith.constant dense<0.000000e+00> : vector<8x128xf32>
    %185 = tpu.matmul %183, %184, %cst_51 {dimension_numbers = #tpu.dot_dimension_numbers<[1], [0], [0], [1], [0, 0, 1, 1], [], []>} : vector<8x32xf32>, vector<32x128xf32>, vector<8x128xf32> -> vector<8x128xf32>
    %186 = arith.addf %182, %185 : vector<8x128xf32>
    %c0_52 = arith.constant 0 : index
    %c0_53 = arith.constant 0 : index
    %187 = vector.load %arg6[%c0_52, %c0_53] : memref<1x128xf32, #tpu.memory_space<vmem>>, vector<1x128xf32>
    %188 = vector.broadcast %187 : vector<1x128xf32> to vector<8x128xf32>
    %189 = arith.addf %186, %188 : vector<8x128xf32>
    %c0_54 = arith.constant 0 : index
    %c0_55 = arith.constant 0 : index
    %c0_56 = arith.constant 0 : index
    %190 = vector.load %arg7[%c0_54, %c0_55, %c0_56] : memref<1x8x128xf32, #tpu.memory_space<vmem>>, vector<1x8x128xf32>
    %191 = vector.shape_cast %190 : vector<1x8x128xf32> to vector<8x128xf32>
    %192 = vector.shape_cast %189 : vector<8x128xf32> to vector<1x8x128xf32>
    tpu.vector_store %arg7[%c0_54, %c0_55, %c0_56], %192 {strides = array<i32>} : memref<1x8x128xf32, #tpu.memory_space<vmem>>, vector<1x8x128xf32>,
    %cst_57 = arith.constant dense<0xFF800000> : vector<8xf32>
    %193 = vector.multi_reduction <maximumf>, %189, %cst_57 [1] : vector<8x128xf32> to vector<8xf32>
    %194 = vector.shape_cast %193 : vector<8xf32> to vector<8x1xf32>
    %195 = tpu.iota {dimensions = array<i32: 1>} : vector<8x128xi32>
    %196 = vector.broadcast %194 : vector<8x1xf32> to vector<8x128xf32>
    %197 = arith.cmpf oeq, %189, %196 : vector<8x128xf32>
    %c128_i32 = arith.constant 128 : i32
    %198 = vector.broadcast %c128_i32 : i32 to vector<8x128xi32>
    %199 = arith.select %197, %195, %198 : vector<8x128xi1>, vector<8x128xi32>
    %cst_58 = arith.constant dense<2147483647> : vector<8xi32>
    %200 = vector.multi_reduction <minsi>, %199, %cst_58 [1] : vector<8x128xi32> to vector<8xi32>
    %201 = vector.shape_cast %200 : vector<8xi32> to vector<8x1xi32>
    %c0_59 = arith.constant 0 : index
    %c0_60 = arith.constant 0 : index
    %c0_61 = arith.constant 0 : index
    %202 = vector.load %arg8[%c0_59, %c0_60, %c0_61] : memref<1x8x1xi32, #tpu.memory_space<vmem>>, vector<1x8x1xi32>
    %203 = vector.shape_cast %202 : vector<1x8x1xi32> to vector<8x1xi32>
    %204 = vector.shape_cast %201 : vector<8x1xi32> to vector<1x8x1xi32>
    tpu.vector_store %arg8[%c0_59, %c0_60, %c0_61], %204 {strides = array<i32>} : memref<1x8x1xi32, #tpu.memory_space<vmem>>, vector<1x8x1xi32>,
    return
  }
  func.func @transform_0(%arg0: i32) -> (i32, i32, i32) {
    %c0_i32 = arith.constant 0 : i32
    %c0_i32_0 = arith.constant 0 : i32
    %c0_i32_1 = arith.constant 0 : i32
    return %arg0, %c0_i32, %c0_i32_0 : i32, i32, i32
  }
  func.func @transform_1(%arg0: i32) -> (i32, i32) {
    %c0_i32 = arith.constant 0 : i32
    %c0_i32_0 = arith.constant 0 : i32
    %c0_i32_1 = arith.constant 0 : i32
    return %c0_i32, %c0_i32_0 : i32, i32
  }
  func.func @transform_2(%arg0: i32) -> (i32, i32) {
    %c0_i32 = arith.constant 0 : i32
    %c0_i32_0 = arith.constant 0 : i32
    %c0_i32_1 = arith.constant 0 : i32
    return %c0_i32, %c0_i32_0 : i32, i32
  }
  func.func @transform_3(%arg0: i32) -> (i32, i32) {
    %c0_i32 = arith.constant 0 : i32
    %c0_i32_0 = arith.constant 0 : i32
    %c0_i32_1 = arith.constant 0 : i32
    return %c0_i32, %c0_i32_0 : i32, i32
  }
  func.func @transform_4(%arg0: i32) -> (i32, i32) {
    %c0_i32 = arith.constant 0 : i32
    %c0_i32_0 = arith.constant 0 : i32
    %c0_i32_1 = arith.constant 0 : i32
    return %c0_i32, %c0_i32_0 : i32, i32
  }
  func.func @transform_5(%arg0: i32) -> (i32, i32) {
    %c0_i32 = arith.constant 0 : i32
    %c0_i32_0 = arith.constant 0 : i32
    %c0_i32_1 = arith.constant 0 : i32
    return %c0_i32, %c0_i32_0 : i32, i32
  }
  func.func @transform_6(%arg0: i32) -> (i32, i32, i32) {
    %c0_i32 = arith.constant 0 : i32
    %c0_i32_0 = arith.constant 0 : i32
    %c0_i32_1 = arith.constant 0 : i32
    return %arg0, %c0_i32, %c0_i32_0 : i32, i32, i32
  }
  func.func @transform_7(%arg0: i32) -> (i32, i32, i32) {
    %c0_i32 = arith.constant 0 : i32
    %c0_i32_0 = arith.constant 0 : i32
    %c0_i32_1 = arith.constant 0 : i32
    return %arg0, %c0_i32, %c0_i32_0 : i32, i32, i32
  }
}

</mosaic_0001>

<llo_original>
// kernel: relation_classifier_forward.1
$region0: #{relation_classifier_forward.1}
  #allocation0 [shape = 'u32[]', space=smem, size = 0x4, offset = 0x4, fixed_abs, tag = 'smem constant byte address 0x4 - core index']
  #allocation1 [shape = 'u32[72,128]{1,0:T(1,128)}', space=vmem, size = 0x9000, scoped, tag = 'internal scratch']
  %s0 = inlined_call_operand.vmem [shape: s32[1,128,1], index: 0, kind: input, shape index: {}]
  %s1 = inlined_call_operand.vmem [shape: f32[128,128], index: 1, kind: input, shape index: {}]
  %s2 = inlined_call_operand.vmem [shape: f32[32,128], index: 2, kind: input, shape index: {}]
  %s3 = inlined_call_operand.vmem [shape: f32[1,128], index: 3, kind: input, shape index: {}]
  %s4 = inlined_call_operand.hbm [shape: f32[96,128], index: 4, kind: input, shape index: {}]
  %s5 = inlined_call_operand.vmem [shape: f32[1,128], index: 5, kind: input, shape index: {}]
  %s6 = inlined_call_operand.vmem [shape: f32[1,8,128], index: 6, kind: output, shape index: {0}]
  %s7 = inlined_call_operand.vmem [shape: s32[1,8,1], index: 7, kind: output, shape index: {1}]
  %8 = xla_tuple %s6, %s7
  %s9 = sld [smem:[#allocation0]]
  $region46: #{relation_classifier_forward.1} parent=0
    _
  %s11 = ssub.s32 1, %s9
  %s12 = scalar_select 0, %s11, %s9
  $region1: #{relation_classifier_forward.1} parent=0
    #allocation2 [shape = 'u8[49152]{0}', space=vmem, size = 0xc000, scoped, tag = 'input window, operand 4, single buffered']
    #allocation3 [shape = 's32[1]{0}', space=sflag, size = 0x4, scoped, tag = 'scoped memory for relation_classifier_forward.1']
    %13 = vsyncpa [#allocation3], 0
    // Predicated region
    $region2: #{relation_classifier_forward.1} parent=1 // pred_check
      _
    $region3: #{relation_classifier_forward.1} parent=1 // pred_check_branch
      %15 = sbr.rel (0) target = $region5
    $region4: #{relation_classifier_forward.1} parent=1 // pred_region
      _
    $region5: #{relation_classifier_forward.1} parent=1 // pred_fallthru
      _
    // Predicated region
    $region6: #{relation_classifier_forward.1} parent=1 // pred_check
      _
    $region7: #{relation_classifier_forward.1} parent=1 // pred_check_branch
      %17 = sbr.rel (0) target = $region9
    $region8: #{relation_classifier_forward.1} parent=1 // pred_region
      _
    $region9: #{relation_classifier_forward.1} parent=1 // pred_fallthru
      _
    // Predicated region
    $region10: #{relation_classifier_forward.1} parent=1 // pred_check
      _
    $region11: #{relation_classifier_forward.1} parent=1 // pred_check_branch
      %19 = sbr.rel (0) target = $region13
    $region12: #{relation_classifier_forward.1} parent=1 // pred_region
      _
    $region13: #{relation_classifier_forward.1} parent=1 // pred_fallthru
      _
    // Predicated region
    $region14: #{relation_classifier_forward.1} parent=1 // pred_check
      _
    $region15: #{relation_classifier_forward.1} parent=1 // pred_check_branch
      %21 = sbr.rel (0) target = $region17
    $region16: #{relation_classifier_forward.1} parent=1 // pred_region
      _
    $region17: #{relation_classifier_forward.1} parent=1 // pred_fallthru
      _
    // Predicated region
    $region18: #{relation_classifier_forward.1} parent=1 // pred_check
      _
    $region19: #{relation_classifier_forward.1} parent=1 // pred_check_branch
      %23 = sbr.rel (0) target = $region21
    $region20: #{relation_classifier_forward.1} parent=1 // pred_region
      %25 = vsyncadd [#allocation3], 0
      %s26 = sshll.u32 %s4, 4
      %s27 = int_to_ptr.hbm [resolvable:$true] %s26
      %s28 = sshll.u32 [#allocation2], 4
      %s29 = int_to_ptr.vmem [resolvable:$true] %s28
      %34 = dma.hbm_to_vmem [thread:$0]  %s27, 1536, %s29, [#allocation3], 128, 128, 8
    $region21: #{relation_classifier_forward.1} parent=1 // pred_fallthru
      _
    // Predicated region
    $region22: #{relation_classifier_forward.1} parent=1 // pred_check
      _
    $region23: #{relation_classifier_forward.1} parent=1 // pred_check_branch
      %36 = sbr.rel (0) target = $region25
    $region24: #{relation_classifier_forward.1} parent=1 // pred_region
      _
    $region25: #{relation_classifier_forward.1} parent=1 // pred_fallthru
      _
    // Predicated region
    $region26: #{relation_classifier_forward.1} parent=1 // pred_check
      _
    $region27: #{relation_classifier_forward.1} parent=1 // pred_check_branch
      %38 = sbr.rel (0) target = $region29
    $region28: #{relation_classifier_forward.1} parent=1 // pred_region
      %40 = dma.done [#allocation3], 1536
    $region29: #{relation_classifier_forward.1} parent=1 // pred_fallthru
      _
    %v41 = vld [vmem:[%s0] sm:$0xff]
    %v42 = vld [vmem:[%s0 + $0x8] sm:$0xff]
    %v43 = vld [vmem:[%s0 + $0x10] sm:$0xff]
    %v44 = vld [vmem:[%s0 + $0x18] sm:$0xff]
    %v45 = vld [vmem:[%s0 + $0x20] sm:$0xff]
    %v46 = vld [vmem:[%s0 + $0x28] sm:$0xff]
    %v47 = vld [vmem:[%s0 + $0x30] sm:$0xff]
    %v48 = vld [vmem:[%s0 + $0x38] sm:$0xff]
    %v49 = vld [vmem:[%s0 + $0x40] sm:$0xff]
    %v50 = vld [vmem:[%s0 + $0x48] sm:$0xff]
    %v51 = vld [vmem:[%s0 + $0x50] sm:$0xff]
    %v52 = vld [vmem:[%s0 + $0x58] sm:$0xff]
    %v53 = vld [vmem:[%s0 + $0x60] sm:$0xff]
    %v54 = vld [vmem:[%s0 + $0x68] sm:$0xff]
    %v55 = vld [vmem:[%s0 + $0x70] sm:$0xff]
    %v56 = vld [vmem:[%s0 + $0x78] sm:$0xff]
    %v57 = vlaneseq
    %v58 = vand.u32 %v57, 127
    %59 = vset.pattern.permute.xlu0 0
    %60 = vperm.xlu0 %59, %v41
    %v61 = vpop.permute.xlu0 %60
    %62 = vset.pattern.permute.xlu0 0
    %63 = vperm.xlu0 %62, %v42
    %v64 = vpop.permute.xlu0 %63
    %65 = vset.pattern.permute.xlu0 0
    %66 = vperm.xlu0 %65, %v43
    %v67 = vpop.permute.xlu0 %66
    %68 = vset.pattern.permute.xlu0 0
    %69 = vperm.xlu0 %68, %v44
    %v70 = vpop.permute.xlu0 %69
    %71 = vset.pattern.permute.xlu0 0
    %72 = vperm.xlu0 %71, %v45
    %v73 = vpop.permute.xlu0 %72
    %74 = vset.pattern.permute.xlu0 0
    %75 = vperm.xlu0 %74, %v46
    %v76 = vpop.permute.xlu0 %75
    %77 = vset.pattern.permute.xlu0 0
    %78 = vperm.xlu0 %77, %v47
    %v79 = vpop.permute.xlu0 %78
    %80 = vset.pattern.permute.xlu0 0
    %81 = vperm.xlu0 %80, %v48
    %v82 = vpop.permute.xlu0 %81
    %83 = vset.pattern.permute.xlu0 0
    %84 = vperm.xlu0 %83, %v49
    %v85 = vpop.permute.xlu0 %84
    %86 = vset.pattern.permute.xlu0 0
    %87 = vperm.xlu0 %86, %v50
    %v88 = vpop.permute.xlu0 %87
    %89 = vset.pattern.permute.xlu0 0
    %90 = vperm.xlu0 %89, %v51
    %v91 = vpop.permute.xlu0 %90
    %92 = vset.pattern.permute.xlu0 0
    %93 = vperm.xlu0 %92, %v52
    %v94 = vpop.permute.xlu0 %93
    %95 = vset.pattern.permute.xlu0 0
    %96 = vperm.xlu0 %95, %v53
    %v97 = vpop.permute.xlu0 %96
    %98 = vset.pattern.permute.xlu0 0
    %99 = vperm.xlu0 %98, %v54
    %v100 = vpop.permute.xlu0 %99
    %101 = vset.pattern.permute.xlu0 0
    %102 = vperm.xlu0 %101, %v55
    %v103 = vpop.permute.xlu0 %102
    %104 = vset.pattern.permute.xlu0 0
    %105 = vperm.xlu0 %104, %v56
    %v106 = vpop.permute.xlu0 %105
    %vm107 = vcmp.eq.s32.totalorder %v61, %v58
    %vm108 = vcmp.eq.s32.totalorder %v64, %v58
    %vm109 = vcmp.eq.s32.totalorder %v67, %v58
    %vm110 = vcmp.eq.s32.totalorder %v70, %v58
    %vm111 = vcmp.eq.s32.totalorder %v73, %v58
    %vm112 = vcmp.eq.s32.totalorder %v76, %v58
    %vm113 = vcmp.eq.s32.totalorder %v79, %v58
    %vm114 = vcmp.eq.s32.totalorder %v82, %v58
    %vm115 = vcmp.eq.s32.totalorder %v85, %v58
    %vm116 = vcmp.eq.s32.totalorder %v88, %v58
    %vm117 = vcmp.eq.s32.totalorder %v91, %v58
    %vm118 = vcmp.eq.s32.totalorder %v94, %v58
    %vm119 = vcmp.eq.s32.totalorder %v97, %v58
    %vm120 = vcmp.eq.s32.totalorder %v100, %v58
    %vm121 = vcmp.eq.s32.totalorder %v103, %v58
    %vm122 = vcmp.eq.s32.totalorder %v106, %v58
    %v123 = vsel %vm107, 1, 0
    %v124 = vsel %vm108, 1, 0
    %v125 = vsel %vm109, 1, 0
    %v126 = vsel %vm110, 1, 0
    %v127 = vsel %vm111, 1, 0
    %v128 = vsel %vm112, 1, 0
    %v129 = vsel %vm113, 1, 0
    %v130 = vsel %vm114, 1, 0
    %v131 = vsel %vm115, 1, 0
    %v132 = vsel %vm116, 1, 0
    %v133 = vsel %vm117, 1, 0
    %v134 = vsel %vm118, 1, 0
    %v135 = vsel %vm119, 1, 0
    %v136 = vsel %vm120, 1, 0
    %v137 = vsel %vm121, 1, 0
    %v138 = vsel %vm122, 1, 0
    %v139 = vcvt.s32.f32 %v123
    %v140 = vcvt.s32.f32 %v124
    %v141 = vcvt.s32.f32 %v125
    %v142 = vcvt.s32.f32 %v126
    %v143 = vcvt.s32.f32 %v127
    %v144 = vcvt.s32.f32 %v128
    %v145 = vcvt.s32.f32 %v129
    %v146 = vcvt.s32.f32 %v130
    %v147 = vcvt.s32.f32 %v131
    %v148 = vcvt.s32.f32 %v132
    %v149 = vcvt.s32.f32 %v133
    %v150 = vcvt.s32.f32 %v134
    %v151 = vcvt.s32.f32 %v135
    %v152 = vcvt.s32.f32 %v136
    %v153 = vcvt.s32.f32 %v137
    %v154 = vcvt.s32.f32 %v138
    %v155 = vld [vmem:[%s1] sm:$0xff]
    %v156 = vld [vmem:[%s1 + $0x8] sm:$0xff]
    %v157 = vld [vmem:[%s1 + $0x10] sm:$0xff]
    %v158 = vld [vmem:[%s1 + $0x18] sm:$0xff]
    %v159 = vld [vmem:[%s1 + $0x20] sm:$0xff]
    %v160 = vld [vmem:[%s1 + $0x28] sm:$0xff]
    %v161 = vld [vmem:[%s1 + $0x30] sm:$0xff]
    %v162 = vld [vmem:[%s1 + $0x38] sm:$0xff]
    %v163 = vld [vmem:[%s1 + $0x40] sm:$0xff]
    %v164 = vld [vmem:[%s1 + $0x48] sm:$0xff]
    %v165 = vld [vmem:[%s1 + $0x50] sm:$0xff]
    %v166 = vld [vmem:[%s1 + $0x58] sm:$0xff]
    %v167 = vld [vmem:[%s1 + $0x60] sm:$0xff]
    %v168 = vld [vmem:[%s1 + $0x68] sm:$0xff]
    %v169 = vld [vmem:[%s1 + $0x70] sm:$0xff]
    %v170 = vld [vmem:[%s1 + $0x78] sm:$0xff]
    %v171 = vld [vmem:[%s3] sm:$0x1]
    %v173 = vperm.slane %v171, 0
    %175 = vmatpush.msra.mxu0 %v170
    %176 = vmatpush.msra.mxu0 %v169
    %177 = vmatpush.msra.mxu0 %v168
    %178 = vmatpush.msra.mxu0 %v167
    %179 = vmatpush.msra.mxu0 %v166
    %180 = vmatpush.msra.mxu0 %v165
    %181 = vmatpush.msra.mxu0 %v164
    %182 = vmatpush.msra.mxu0 %v163
    %183 = vmatpush.msra.mxu0 %v162
    %184 = vmatpush.msra.mxu0 %v161
    %185 = vmatpush.msra.mxu0 %v160
    %186 = vmatpush.msra.mxu0 %v159
    %187 = vmatpush.msra.mxu0 %v158
    %188 = vmatpush.msra.mxu0 %v157
    %189 = vmatpush.msra.mxu0 %v156
    %190 = vmatpush.msra.mxu0 %v155
    %191 = vmatmul.f32.gmra.mxu0 %v139
    %v192 = vpop.f32.mrf.mxu0
    %v193 = vadd.f32 %v173, %v192
    %194 = vmatmul.f32.gmra.mxu0 %v140
    %v195 = vpop.f32.mrf.mxu0
    %v196 = vadd.f32 %v173, %v195
    %197 = vmatmul.f32.gmra.mxu0 %v141
    %v198 = vpop.f32.mrf.mxu0
    %v199 = vadd.f32 %v173, %v198
    %200 = vmatmul.f32.gmra.mxu0 %v142
    %v201 = vpop.f32.mrf.mxu0
    %v202 = vadd.f32 %v173, %v201
    %203 = vmatmul.f32.gmra.mxu0 %v143
    %v204 = vpop.f32.mrf.mxu0
    %v205 = vadd.f32 %v173, %v204
    %206 = vmatmul.f32.gmra.mxu0 %v144
    %v207 = vpop.f32.mrf.mxu0
    %v208 = vadd.f32 %v173, %v207
    %209 = vmatmul.f32.gmra.mxu0 %v145
    %v210 = vpop.f32.mrf.mxu0
    %v211 = vadd.f32 %v173, %v210
    %212 = vmatmul.f32.gmra.mxu0 %v146
    %v213 = vpop.f32.mrf.mxu0
    %v214 = vadd.f32 %v173, %v213
    %215 = vmatmul.f32.gmra.mxu0 %v147
    %v216 = vpop.f32.mrf.mxu0
    %v217 = vadd.f32 %v173, %v216
    %218 = vmatmul.f32.gmra.mxu0 %v148
    %v219 = vpop.f32.mrf.mxu0
    %v220 = vadd.f32 %v173, %v219
    %221 = vmatmul.f32.gmra.mxu0 %v149
    %v222 = vpop.f32.mrf.mxu0
    %v223 = vadd.f32 %v173, %v222
    %224 = vmatmul.f32.gmra.mxu0 %v150
    %v225 = vpop.f32.mrf.mxu0
    %v226 = vadd.f32 %v173, %v225
    %227 = vmatmul.f32.gmra.mxu0 %v151
    %v228 = vpop.f32.mrf.mxu0
    %v229 = vadd.f32 %v173, %v228
    %230 = vmatmul.f32.gmra.mxu0 %v152
    %v231 = vpop.f32.mrf.mxu0
    %v232 = vadd.f32 %v173, %v231
    %233 = vmatmul.f32.gmra.mxu0 %v153
    %v234 = vpop.f32.mrf.mxu0
    %v235 = vadd.f32 %v173, %v234
    %236 = vmatmul.f32.gmra.mxu0 %v154
    %v237 = vpop.f32.mrf.mxu0
    %v238 = vadd.f32 %v173, %v237
    %239 = vdwg.mxu0
    %v240 = vld [vmem:[%s2] sm:$0xff]
    %v241 = vld [vmem:[%s2 + $0x8] sm:$0xff]
    %v242 = vld [vmem:[%s2 + $0x10] sm:$0xff]
    %v243 = vld [vmem:[%s2 + $0x18] sm:$0xff]
    %vm244 = vcmask 261120
    %v246 = vsel %vm244, 0.0, 0
    %248 = vmatpush.msra.mxu0 0.0
    %249 = vmatpush.msra.mxu0 0.0
    %250 = vmatpush.msra.mxu0 0.0
    %251 = vmatpush.msra.mxu0 0.0
    %252 = vmatpush.msra.mxu0 0.0
    %253 = vmatpush.msra.mxu0 0.0
    %254 = vmatpush.msra.mxu0 0.0
    %255 = vmatpush.msra.mxu0 0.0
    %256 = vmatpush.msra.mxu0 0.0
    %257 = vmatpush.msra.mxu0 0.0
    %258 = vmatpush.msra.mxu0 0.0
    %259 = vmatpush.msra.mxu0 0.0
    %260 = vmatpush.msra.mxu0 %v243
    %261 = vmatpush.msra.mxu0 %v242
    %262 = vmatpush.msra.mxu0 %v241
    %263 = vmatpush.msra.mxu0 %v240
    %264 = vmatmul.f32.gmra.mxu0 %v246
    %v265 = vpop.f32.mrf.mxu0
    %v266 = vadd.f32 0.0, %v265
    %267 = vmatmul.f32.gmra.mxu0 %v246
    %v268 = vpop.f32.mrf.mxu0
    %v269 = vadd.f32 0.0, %v268
    %270 = vdwg.mxu0
    %v271 = vadd.f32 %v193, %v266
    %v272 = vadd.f32 %v196, %v269
    %v273 = vxor.u32 %v271, 2147483648
    %v274 = vxor.u32 %v272, 2147483648
    %v275 = vmul.f32 %v273, 1.442695
    %v276 = vpow.pop %v275
    %v277 = vmul.f32 %v274, 1.442695
    %v278 = vpow.pop %v277
    %v279 = vadd.f32 %v276, 1.0
    %v280 = vadd.f32 %v278, 1.0
    %v281 = vrcp.pop %v279
    %v282 = vmul.f32 %v279, %v281
    %v283 = vsub.f32 1.0, %v282
    %v284 = vmul.f32 %v281, %v283
    %v285 = vadd.f32 %v281, %v284
    %vm286 = vweird.f32 %v279
    %vm287 = vweird.f32 %v281
    %vm288 = vmor %vm286, %vm287
    %v289 = vsel %vm288, %v281, %v285
    %v290 = vand.u32 2147483647, %v279
    %vm291 = vcmp.eq.f32.partialorder %v290, 8.507059e+37
    %v292 = vand.u32 %v279, 2147483648
    %v293 = vor.u32 1.1754944e-38, %v292
    %v294 = vsel %vm291, %v293, %v289
    %v295 = vmul.f32 1.0, %v294
    %v296 = vrcp.pop %v280
    %v297 = vmul.f32 %v280, %v296
    %v298 = vsub.f32 1.0, %v297
    %v299 = vmul.f32 %v296, %v298
    %v300 = vadd.f32 %v296, %v299
    %vm301 = vweird.f32 %v280
    %vm302 = vweird.f32 %v296
    %vm303 = vmor %vm301, %vm302
    %v304 = vsel %vm303, %v296, %v300
    %v305 = vand.u32 2147483647, %v280
    %vm306 = vcmp.eq.f32.partialorder %v305, 8.507059e+37
    %v307 = vand.u32 %v280, 2147483648
    %v308 = vor.u32 1.1754944e-38, %v307
    %v309 = vsel %vm306, %v308, %v304
    %v310 = vmul.f32 1.0, %v309
    %311 = vrot.lane.b32.xlu0 %v295, 64
    %v312 = vpop.permute.xlu0 %311
    %313 = vrot.lane.b32.xlu0 %v310, 64
    %v314 = vpop.permute.xlu0 %313
    %315 = vrot.lane.b32.xlu0 %v271, 96
    %v316 = vpop.permute.xlu0 %315
    %317 = vrot.lane.b32.xlu0 %v272, 96
    %v318 = vpop.permute.xlu0 %317
    %v319 = vmul.f32 %v312, %v316
    %v320 = vmul.f32 %v314, %v318
    %v321 = vadd.f32 %v271, %v319
    %v322 = vadd.f32 %v272, %v320
    %v323 = vtanh.pop %v321
    %v324 = vtanh.pop %v322
    %v325 = vsub.f32 1.0, %v295
    %v326 = vsub.f32 1.0, %v310
    %329 = vrot.lane.b32.xlu0 %v323, 96
    %v330 = vpop.permute.xlu0 %329
    %331 = vrot.lane.b32.xlu0 %v324, 96
    %v332 = vpop.permute.xlu0 %331
    %v335 = vmul.f32 %v325, %v330
    %v336 = vmul.f32 %v326, %v332
    %v337 = vmul.f32 %v295, 0.0
    %v338 = vmul.f32 %v310, 0.0
    %v339 = vadd.f32 %v335, %v337
    %v340 = vadd.f32 %v336, %v338
    %343 = vrot.lane.b32.xlu0 %v339, 96
    %v344 = vpop.permute.xlu0 %343
    %345 = vrot.lane.b32.xlu0 %v340, 96
    %v346 = vpop.permute.xlu0 %345
    %v347 = vsel %vm244, %v344, 0
    %v349 = vsel %vm244, %v346, 0
    %351 = vmatpush.msra.mxu0 0.0
    %352 = vmatpush.msra.mxu0 0.0
    %353 = vmatpush.msra.mxu0 0.0
    %354 = vmatpush.msra.mxu0 0.0
    %355 = vmatpush.msra.mxu0 0.0
    %356 = vmatpush.msra.mxu0 0.0
    %357 = vmatpush.msra.mxu0 0.0
    %358 = vmatpush.msra.mxu0 0.0
    %359 = vmatpush.msra.mxu0 0.0
    %360 = vmatpush.msra.mxu0 0.0
    %361 = vmatpush.msra.mxu0 0.0
    %362 = vmatpush.msra.mxu0 0.0
    %363 = vmatpush.msra.mxu0 %v243
    %364 = vmatpush.msra.mxu0 %v242
    %365 = vmatpush.msra.mxu0 %v241
    %366 = vmatpush.msra.mxu0 %v240
    %367 = vmatmul.f32.gmra.mxu0 %v347
    %v368 = vpop.f32.mrf.mxu0
    %v369 = vadd.f32 0.0, %v368
    %370 = vmatmul.f32.gmra.mxu0 %v349
    %v371 = vpop.f32.mrf.mxu0
    %v372 = vadd.f32 0.0, %v371
    %373 = vdwg.mxu0
    %v374 = vadd.f32 %v199, %v369
    %v375 = vadd.f32 %v202, %v372
    %v376 = vxor.u32 %v374, 2147483648
    %v377 = vxor.u32 %v375, 2147483648
    %v378 = vmul.f32 %v376, 1.442695
    %v379 = vpow.pop %v378
    %v380 = vmul.f32 %v377, 1.442695
    %v381 = vpow.pop %v380
    %v382 = vadd.f32 %v379, 1.0
    %v383 = vadd.f32 %v381, 1.0
    %v384 = vrcp.pop %v382
    %v385 = vmul.f32 %v382, %v384
    %v386 = vsub.f32 1.0, %v385
    %v387 = vmul.f32 %v384, %v386
    %v388 = vadd.f32 %v384, %v387
    %vm389 = vweird.f32 %v382
    %vm390 = vweird.f32 %v384
    %vm391 = vmor %vm389, %vm390
    %v392 = vsel %vm391, %v384, %v388
    %v393 = vand.u32 2147483647, %v382
    %vm394 = vcmp.eq.f32.partialorder %v393, 8.507059e+37
    %v395 = vand.u32 %v382, 2147483648
    %v396 = vor.u32 1.1754944e-38, %v395
    %v397 = vsel %vm394, %v396, %v392
    %v398 = vmul.f32 1.0, %v397
    %v399 = vrcp.pop %v383
    %v400 = vmul.f32 %v383, %v399
    %v401 = vsub.f32 1.0, %v400
    %v402 = vmul.f32 %v399, %v401
    %v403 = vadd.f32 %v399, %v402
    %vm404 = vweird.f32 %v383
    %vm405 = vweird.f32 %v399
    %vm406 = vmor %vm404, %vm405
    %v407 = vsel %vm406, %v399, %v403
    %v408 = vand.u32 2147483647, %v383
    %vm409 = vcmp.eq.f32.partialorder %v408, 8.507059e+37
    %v410 = vand.u32 %v383, 2147483648
    %v411 = vor.u32 1.1754944e-38, %v410
    %v412 = vsel %vm409, %v411, %v407
    %v413 = vmul.f32 1.0, %v412
    %414 = vrot.lane.b32.xlu0 %v398, 64
    %v415 = vpop.permute.xlu0 %414
    %416 = vrot.lane.b32.xlu0 %v413, 64
    %v417 = vpop.permute.xlu0 %416
    %418 = vrot.lane.b32.xlu0 %v374, 96
    %v419 = vpop.permute.xlu0 %418
    %420 = vrot.lane.b32.xlu0 %v375, 96
    %v421 = vpop.permute.xlu0 %420
    %v422 = vmul.f32 %v415, %v419
    %v423 = vmul.f32 %v417, %v421
    %v424 = vadd.f32 %v374, %v422
    %v425 = vadd.f32 %v375, %v423
    %v426 = vtanh.pop %v424
    %v427 = vtanh.pop %v425
    %v428 = vsub.f32 1.0, %v398
    %v429 = vsub.f32 1.0, %v413
    %432 = vrot.lane.b32.xlu0 %v426, 96
    %v433 = vpop.permute.xlu0 %432
    %434 = vrot.lane.b32.xlu0 %v427, 96
    %v435 = vpop.permute.xlu0 %434
    %v438 = vmul.f32 %v428, %v433
    %v439 = vmul.f32 %v429, %v435
    %v440 = vmul.f32 %v398, %v339
    %v441 = vmul.f32 %v413, %v340
    %v442 = vadd.f32 %v438, %v440
    %v443 = vadd.f32 %v439, %v441
    %446 = vrot.lane.b32.xlu0 %v442, 96
    %v447 = vpop.permute.xlu0 %446
    %448 = vrot.lane.b32.xlu0 %v443, 96
    %v449 = vpop.permute.xlu0 %448
    %v450 = vsel %vm244, %v447, 0
    %v452 = vsel %vm244, %v449, 0
    %454 = vmatpush.msra.mxu0 0.0
    %455 = vmatpush.msra.mxu0 0.0
    %456 = vmatpush.msra.mxu0 0.0
    %457 = vmatpush.msra.mxu0 0.0
    %458 = vmatpush.msra.mxu0 0.0
    %459 = vmatpush.msra.mxu0 0.0
    %460 = vmatpush.msra.mxu0 0.0
    %461 = vmatpush.msra.mxu0 0.0
    %462 = vmatpush.msra.mxu0 0.0
    %463 = vmatpush.msra.mxu0 0.0
    %464 = vmatpush.msra.mxu0 0.0
    %465 = vmatpush.msra.mxu0 0.0
    %466 = vmatpush.msra.mxu0 %v243
    %467 = vmatpush.msra.mxu0 %v242
    %468 = vmatpush.msra.mxu0 %v241
    %469 = vmatpush.msra.mxu0 %v240
    %470 = vmatmul.f32.gmra.mxu0 %v450
    %v471 = vpop.f32.mrf.mxu0
    %v472 = vadd.f32 0.0, %v471
    %473 = vmatmul.f32.gmra.mxu0 %v452
    %v474 = vpop.f32.mrf.mxu0
    %v475 = vadd.f32 0.0, %v474
    %476 = vdwg.mxu0
    %v477 = vadd.f32 %v205, %v472
    %v478 = vadd.f32 %v208, %v475
    %v479 = vxor.u32 %v477, 2147483648
    %v480 = vxor.u32 %v478, 2147483648
    %v481 = vmul.f32 %v479, 1.442695
    %v482 = vpow.pop %v481
    %v483 = vmul.f32 %v480, 1.442695
    %v484 = vpow.pop %v483
    %v485 = vadd.f32 %v482, 1.0
    %v486 = vadd.f32 %v484, 1.0
    %v487 = vrcp.pop %v485
    %v488 = vmul.f32 %v485, %v487
    %v489 = vsub.f32 1.0, %v488
    %v490 = vmul.f32 %v487, %v489
    %v491 = vadd.f32 %v487, %v490
    %vm492 = vweird.f32 %v485
    %vm493 = vweird.f32 %v487
    %vm494 = vmor %vm492, %vm493
    %v495 = vsel %vm494, %v487, %v491
    %v496 = vand.u32 2147483647, %v485
    %vm497 = vcmp.eq.f32.partialorder %v496, 8.507059e+37
    %v498 = vand.u32 %v485, 2147483648
    %v499 = vor.u32 1.1754944e-38, %v498
    %v500 = vsel %vm497, %v499, %v495
    %v501 = vmul.f32 1.0, %v500
    %v502 = vrcp.pop %v486
    %v503 = vmul.f32 %v486, %v502
    %v504 = vsub.f32 1.0, %v503
    %v505 = vmul.f32 %v502, %v504
    %v506 = vadd.f32 %v502, %v505
    %vm507 = vweird.f32 %v486
    %vm508 = vweird.f32 %v502
    %vm509 = vmor %vm507, %vm508
    %v510 = vsel %vm509, %v502, %v506
    %v511 = vand.u32 2147483647, %v486
    %vm512 = vcmp.eq.f32.partialorder %v511, 8.507059e+37
    %v513 = vand.u32 %v486, 2147483648
    %v514 = vor.u32 1.1754944e-38, %v513
    %v515 = vsel %vm512, %v514, %v510
    %v516 = vmul.f32 1.0, %v515
    %517 = vrot.lane.b32.xlu0 %v501, 64
    %v518 = vpop.permute.xlu0 %517
    %519 = vrot.lane.b32.xlu0 %v516, 64
    %v520 = vpop.permute.xlu0 %519
    %521 = vrot.lane.b32.xlu0 %v477, 96
    %v522 = vpop.permute.xlu0 %521
    %523 = vrot.lane.b32.xlu0 %v478, 96
    %v524 = vpop.permute.xlu0 %523
    %v525 = vmul.f32 %v518, %v522
    %v526 = vmul.f32 %v520, %v524
    %v527 = vadd.f32 %v477, %v525
    %v528 = vadd.f32 %v478, %v526
    %v529 = vtanh.pop %v527
    %v530 = vtanh.pop %v528
    %v531 = vsub.f32 1.0, %v501
    %v532 = vsub.f32 1.0, %v516
    %535 = vrot.lane.b32.xlu0 %v529, 96
    %v536 = vpop.permute.xlu0 %535
    %537 = vrot.lane.b32.xlu0 %v530, 96
    %v538 = vpop.permute.xlu0 %537
    %v541 = vmul.f32 %v531, %v536
    %v542 = vmul.f32 %v532, %v538
    %v543 = vmul.f32 %v501, %v442
    %v544 = vmul.f32 %v516, %v443
    %v545 = vadd.f32 %v541, %v543
    %v546 = vadd.f32 %v542, %v544
    %549 = vrot.lane.b32.xlu0 %v545, 96
    %v550 = vpop.permute.xlu0 %549
    %551 = vrot.lane.b32.xlu0 %v546, 96
    %v552 = vpop.permute.xlu0 %551
    %v553 = vsel %vm244, %v550, 0
    %v555 = vsel %vm244, %v552, 0
    %557 = vmatpush.msra.mxu0 0.0
    %558 = vmatpush.msra.mxu0 0.0
    %559 = vmatpush.msra.mxu0 0.0
    %560 = vmatpush.msra.mxu0 0.0
    %561 = vmatpush.msra.mxu0 0.0
    %562 = vmatpush.msra.mxu0 0.0
    %563 = vmatpush.msra.mxu0 0.0
    %564 = vmatpush.msra.mxu0 0.0
    %565 = vmatpush.msra.mxu0 0.0
    %566 = vmatpush.msra.mxu0 0.0
    %567 = vmatpush.msra.mxu0 0.0
    %568 = vmatpush.msra.mxu0 0.0
    %569 = vmatpush.msra.mxu0 %v243
    %570 = vmatpush.msra.mxu0 %v242
    %571 = vmatpush.msra.mxu0 %v241
    %572 = vmatpush.msra.mxu0 %v240
    %573 = vmatmul.f32.gmra.mxu0 %v553
    %v574 = vpop.f32.mrf.mxu0
    %v575 = vadd.f32 0.0, %v574
    %576 = vmatmul.f32.gmra.mxu0 %v555
    %v577 = vpop.f32.mrf.mxu0
    %v578 = vadd.f32 0.0, %v577
    %579 = vdwg.mxu0
    %v580 = vadd.f32 %v211, %v575
    %v581 = vadd.f32 %v214, %v578
    %v582 = vxor.u32 %v580, 2147483648
    %v583 = vxor.u32 %v581, 2147483648
    %v584 = vmul.f32 %v582, 1.442695
    %v585 = vpow.pop %v584
    %v586 = vmul.f32 %v583, 1.442695
    %v587 = vpow.pop %v586
    %v588 = vadd.f32 %v585, 1.0
    %v589 = vadd.f32 %v587, 1.0
    %v590 = vrcp.pop %v588
    %v591 = vmul.f32 %v588, %v590
    %v592 = vsub.f32 1.0, %v591
    %v593 = vmul.f32 %v590, %v592
    %v594 = vadd.f32 %v590, %v593
    %vm595 = vweird.f32 %v588
    %vm596 = vweird.f32 %v590
    %vm597 = vmor %vm595, %vm596
    %v598 = vsel %vm597, %v590, %v594
    %v599 = vand.u32 2147483647, %v588
    %vm600 = vcmp.eq.f32.partialorder %v599, 8.507059e+37
    %v601 = vand.u32 %v588, 2147483648
    %v602 = vor.u32 1.1754944e-38, %v601
    %v603 = vsel %vm600, %v602, %v598
    %v604 = vmul.f32 1.0, %v603
    %v605 = vrcp.pop %v589
    %v606 = vmul.f32 %v589, %v605
    %v607 = vsub.f32 1.0, %v606
    %v608 = vmul.f32 %v605, %v607
    %v609 = vadd.f32 %v605, %v608
    %vm610 = vweird.f32 %v589
    %vm611 = vweird.f32 %v605
    %vm612 = vmor %vm610, %vm611
    %v613 = vsel %vm612, %v605, %v609
    %v614 = vand.u32 2147483647, %v589
    %vm615 = vcmp.eq.f32.partialorder %v614, 8.507059e+37
    %v616 = vand.u32 %v589, 2147483648
    %v617 = vor.u32 1.1754944e-38, %v616
    %v618 = vsel %vm615, %v617, %v613
    %v619 = vmul.f32 1.0, %v618
    %620 = vrot.lane.b32.xlu0 %v604, 64
    %v621 = vpop.permute.xlu0 %620
    %622 = vrot.lane.b32.xlu0 %v619, 64
    %v623 = vpop.permute.xlu0 %622
    %624 = vrot.lane.b32.xlu0 %v580, 96
    %v625 = vpop.permute.xlu0 %624
    %626 = vrot.lane.b32.xlu0 %v581, 96
    %v627 = vpop.permute.xlu0 %626
    %v628 = vmul.f32 %v621, %v625
    %v629 = vmul.f32 %v623, %v627
    %v630 = vadd.f32 %v580, %v628
    %v631 = vadd.f32 %v581, %v629
    %v632 = vtanh.pop %v630
    %v633 = vtanh.pop %v631
    %v634 = vsub.f32 1.0, %v604
    %v635 = vsub.f32 1.0, %v619
    %638 = vrot.lane.b32.xlu0 %v632, 96
    %v639 = vpop.permute.xlu0 %638
    %640 = vrot.lane.b32.xlu0 %v633, 96
    %v641 = vpop.permute.xlu0 %640
    %v644 = vmul.f32 %v634, %v639
    %v645 = vmul.f32 %v635, %v641
    %v646 = vmul.f32 %v604, %v545
    %v647 = vmul.f32 %v619, %v546
    %v648 = vadd.f32 %v644, %v646
    %v649 = vadd.f32 %v645, %v647
    %652 = vrot.lane.b32.xlu0 %v648, 96
    %v653 = vpop.permute.xlu0 %652
    %654 = vrot.lane.b32.xlu0 %v649, 96
    %v655 = vpop.permute.xlu0 %654
    %v656 = vsel %vm244, %v653, 0
    %v658 = vsel %vm244, %v655, 0
    %660 = vmatpush.msra.mxu0 0.0
    %661 = vmatpush.msra.mxu0 0.0
    %662 = vmatpush.msra.mxu0 0.0
    %663 = vmatpush.msra.mxu0 0.0
    %664 = vmatpush.msra.mxu0 0.0
    %665 = vmatpush.msra.mxu0 0.0
    %666 = vmatpush.msra.mxu0 0.0
    %667 = vmatpush.msra.mxu0 0.0
    %668 = vmatpush.msra.mxu0 0.0
    %669 = vmatpush.msra.mxu0 0.0
    %670 = vmatpush.msra.mxu0 0.0
    %671 = vmatpush.msra.mxu0 0.0
    %672 = vmatpush.msra.mxu0 %v243
    %673 = vmatpush.msra.mxu0 %v242
    %674 = vmatpush.msra.mxu0 %v241
    %675 = vmatpush.msra.mxu0 %v240
    %676 = vmatmul.f32.gmra.mxu0 %v656
    %v677 = vpop.f32.mrf.mxu0
    %v678 = vadd.f32 0.0, %v677
    %679 = vmatmul.f32.gmra.mxu0 %v658
    %v680 = vpop.f32.mrf.mxu0
    %v681 = vadd.f32 0.0, %v680
    %682 = vdwg.mxu0
    %v683 = vadd.f32 %v217, %v678
    %v684 = vadd.f32 %v220, %v681
    %v685 = vxor.u32 %v683, 2147483648
    %v686 = vxor.u32 %v684, 2147483648
    %v687 = vmul.f32 %v685, 1.442695
    %v688 = vpow.pop %v687
    %v689 = vmul.f32 %v686, 1.442695
    %v690 = vpow.pop %v689
    %v691 = vadd.f32 %v688, 1.0
    %v692 = vadd.f32 %v690, 1.0
    %v693 = vrcp.pop %v691
    %v694 = vmul.f32 %v691, %v693
    %v695 = vsub.f32 1.0, %v694
    %v696 = vmul.f32 %v693, %v695
    %v697 = vadd.f32 %v693, %v696
    %vm698 = vweird.f32 %v691
    %vm699 = vweird.f32 %v693
    %vm700 = vmor %vm698, %vm699
    %v701 = vsel %vm700, %v693, %v697
    %v702 = vand.u32 2147483647, %v691
    %vm703 = vcmp.eq.f32.partialorder %v702, 8.507059e+37
    %v704 = vand.u32 %v691, 2147483648
    %v705 = vor.u32 1.1754944e-38, %v704
    %v706 = vsel %vm703, %v705, %v701
    %v707 = vmul.f32 1.0, %v706
    %v708 = vrcp.pop %v692
    %v709 = vmul.f32 %v692, %v708
    %v710 = vsub.f32 1.0, %v709
    %v711 = vmul.f32 %v708, %v710
    %v712 = vadd.f32 %v708, %v711
    %vm713 = vweird.f32 %v692
    %vm714 = vweird.f32 %v708
    %vm715 = vmor %vm713, %vm714
    %v716 = vsel %vm715, %v708, %v712
    %v717 = vand.u32 2147483647, %v692
    %vm718 = vcmp.eq.f32.partialorder %v717, 8.507059e+37
    %v719 = vand.u32 %v692, 2147483648
    %v720 = vor.u32 1.1754944e-38, %v719
    %v721 = vsel %vm718, %v720, %v716
    %v722 = vmul.f32 1.0, %v721
    %723 = vrot.lane.b32.xlu0 %v707, 64
    %v724 = vpop.permute.xlu0 %723
    %725 = vrot.lane.b32.xlu0 %v722, 64
    %v726 = vpop.permute.xlu0 %725
    %727 = vrot.lane.b32.xlu0 %v683, 96
    %v728 = vpop.permute.xlu0 %727
    %729 = vrot.lane.b32.xlu0 %v684, 96
    %v730 = vpop.permute.xlu0 %729
    %v731 = vmul.f32 %v724, %v728
    %v732 = vmul.f32 %v726, %v730
    %v733 = vadd.f32 %v683, %v731
    %v734 = vadd.f32 %v684, %v732
    %v735 = vtanh.pop %v733
    %v736 = vtanh.pop %v734
    %v737 = vsub.f32 1.0, %v707
    %v738 = vsub.f32 1.0, %v722
    %741 = vrot.lane.b32.xlu0 %v735, 96
    %v742 = vpop.permute.xlu0 %741
    %743 = vrot.lane.b32.xlu0 %v736, 96
    %v744 = vpop.permute.xlu0 %743
    %v747 = vmul.f32 %v737, %v742
    %v748 = vmul.f32 %v738, %v744
    %v749 = vmul.f32 %v707, %v648
    %v750 = vmul.f32 %v722, %v649
    %v751 = vadd.f32 %v747, %v749
    %v752 = vadd.f32 %v748, %v750
    %755 = vrot.lane.b32.xlu0 %v751, 96
    %v756 = vpop.permute.xlu0 %755
    %757 = vrot.lane.b32.xlu0 %v752, 96
    %v758 = vpop.permute.xlu0 %757
    %v759 = vsel %vm244, %v756, 0
    %v761 = vsel %vm244, %v758, 0
    %763 = vmatpush.msra.mxu0 0.0
    %764 = vmatpush.msra.mxu0 0.0
    %765 = vmatpush.msra.mxu0 0.0
    %766 = vmatpush.msra.mxu0 0.0
    %767 = vmatpush.msra.mxu0 0.0
    %768 = vmatpush.msra.mxu0 0.0
    %769 = vmatpush.msra.mxu0 0.0
    %770 = vmatpush.msra.mxu0 0.0
    %771 = vmatpush.msra.mxu0 0.0
    %772 = vmatpush.msra.mxu0 0.0
    %773 = vmatpush.msra.mxu0 0.0
    %774 = vmatpush.msra.mxu0 0.0
    %775 = vmatpush.msra.mxu0 %v243
    %776 = vmatpush.msra.mxu0 %v242
    %777 = vmatpush.msra.mxu0 %v241
    %778 = vmatpush.msra.mxu0 %v240
    %779 = vmatmul.f32.gmra.mxu0 %v759
    %v780 = vpop.f32.mrf.mxu0
    %v781 = vadd.f32 0.0, %v780
    %782 = vmatmul.f32.gmra.mxu0 %v761
    %v783 = vpop.f32.mrf.mxu0
    %v784 = vadd.f32 0.0, %v783
    %785 = vdwg.mxu0
    %v786 = vadd.f32 %v223, %v781
    %v787 = vadd.f32 %v226, %v784
    %v788 = vxor.u32 %v786, 2147483648
    %v789 = vxor.u32 %v787, 2147483648
    %v790 = vmul.f32 %v788, 1.442695
    %v791 = vpow.pop %v790
    %v792 = vmul.f32 %v789, 1.442695
    %v793 = vpow.pop %v792
    %v794 = vadd.f32 %v791, 1.0
    %v795 = vadd.f32 %v793, 1.0
    %v796 = vrcp.pop %v794
    %v797 = vmul.f32 %v794, %v796
    %v798 = vsub.f32 1.0, %v797
    %v799 = vmul.f32 %v796, %v798
    %v800 = vadd.f32 %v796, %v799
    %vm801 = vweird.f32 %v794
    %vm802 = vweird.f32 %v796
    %vm803 = vmor %vm801, %vm802
    %v804 = vsel %vm803, %v796, %v800
    %v805 = vand.u32 2147483647, %v794
    %vm806 = vcmp.eq.f32.partialorder %v805, 8.507059e+37
    %v807 = vand.u32 %v794, 2147483648
    %v808 = vor.u32 1.1754944e-38, %v807
    %v809 = vsel %vm806, %v808, %v804
    %v810 = vmul.f32 1.0, %v809
    %v811 = vrcp.pop %v795
    %v812 = vmul.f32 %v795, %v811
    %v813 = vsub.f32 1.0, %v812
    %v814 = vmul.f32 %v811, %v813
    %v815 = vadd.f32 %v811, %v814
    %vm816 = vweird.f32 %v795
    %vm817 = vweird.f32 %v811
    %vm818 = vmor %vm816, %vm817
    %v819 = vsel %vm818, %v811, %v815
    %v820 = vand.u32 2147483647, %v795
    %vm821 = vcmp.eq.f32.partialorder %v820, 8.507059e+37
    %v822 = vand.u32 %v795, 2147483648
    %v823 = vor.u32 1.1754944e-38, %v822
    %v824 = vsel %vm821, %v823, %v819
    %v825 = vmul.f32 1.0, %v824
    %826 = vrot.lane.b32.xlu0 %v810, 64
    %v827 = vpop.permute.xlu0 %826
    %828 = vrot.lane.b32.xlu0 %v825, 64
    %v829 = vpop.permute.xlu0 %828
    %830 = vrot.lane.b32.xlu0 %v786, 96
    %v831 = vpop.permute.xlu0 %830
    %832 = vrot.lane.b32.xlu0 %v787, 96
    %v833 = vpop.permute.xlu0 %832
    %v834 = vmul.f32 %v827, %v831
    %v835 = vmul.f32 %v829, %v833
    %v836 = vadd.f32 %v786, %v834
    %v837 = vadd.f32 %v787, %v835
    %v838 = vtanh.pop %v836
    %v839 = vtanh.pop %v837
    %v840 = vsub.f32 1.0, %v810
    %v841 = vsub.f32 1.0, %v825
    %844 = vrot.lane.b32.xlu0 %v838, 96
    %v845 = vpop.permute.xlu0 %844
    %846 = vrot.lane.b32.xlu0 %v839, 96
    %v847 = vpop.permute.xlu0 %846
    %v850 = vmul.f32 %v840, %v845
    %v851 = vmul.f32 %v841, %v847
    %v852 = vmul.f32 %v810, %v751
    %v853 = vmul.f32 %v825, %v752
    %v854 = vadd.f32 %v850, %v852
    %v855 = vadd.f32 %v851, %v853
    %858 = vrot.lane.b32.xlu0 %v854, 96
    %v859 = vpop.permute.xlu0 %858
    %860 = vrot.lane.b32.xlu0 %v855, 96
    %v861 = vpop.permute.xlu0 %860
    %v862 = vsel %vm244, %v859, 0
    %v864 = vsel %vm244, %v861, 0
    %866 = vmatpush.msra.mxu0 0.0
    %867 = vmatpush.msra.mxu0 0.0
    %868 = vmatpush.msra.mxu0 0.0
    %869 = vmatpush.msra.mxu0 0.0
    %870 = vmatpush.msra.mxu0 0.0
    %871 = vmatpush.msra.mxu0 0.0
    %872 = vmatpush.msra.mxu0 0.0
    %873 = vmatpush.msra.mxu0 0.0
    %874 = vmatpush.msra.mxu0 0.0
    %875 = vmatpush.msra.mxu0 0.0
    %876 = vmatpush.msra.mxu0 0.0
    %877 = vmatpush.msra.mxu0 0.0
    %878 = vmatpush.msra.mxu0 %v243
    %879 = vmatpush.msra.mxu0 %v242
    %880 = vmatpush.msra.mxu0 %v241
    %881 = vmatpush.msra.mxu0 %v240
    %882 = vmatmul.f32.gmra.mxu0 %v862
    %v883 = vpop.f32.mrf.mxu0
    %v884 = vadd.f32 0.0, %v883
    %885 = vmatmul.f32.gmra.mxu0 %v864
    %v886 = vpop.f32.mrf.mxu0
    %v887 = vadd.f32 0.0, %v886
    %888 = vdwg.mxu0
    %v889 = vadd.f32 %v229, %v884
    %v890 = vadd.f32 %v232, %v887
    %v891 = vxor.u32 %v889, 2147483648
    %v892 = vxor.u32 %v890, 2147483648
    %v893 = vmul.f32 %v891, 1.442695
    %v894 = vpow.pop %v893
    %v895 = vmul.f32 %v892, 1.442695
    %v896 = vpow.pop %v895
    %v897 = vadd.f32 %v894, 1.0
    %v898 = vadd.f32 %v896, 1.0
    %v899 = vrcp.pop %v897
    %v900 = vmul.f32 %v897, %v899
    %v901 = vsub.f32 1.0, %v900
    %v902 = vmul.f32 %v899, %v901
    %v903 = vadd.f32 %v899, %v902
    %vm904 = vweird.f32 %v897
    %vm905 = vweird.f32 %v899
    %vm906 = vmor %vm904, %vm905
    %v907 = vsel %vm906, %v899, %v903
    %v908 = vand.u32 2147483647, %v897
    %vm909 = vcmp.eq.f32.partialorder %v908, 8.507059e+37
    %v910 = vand.u32 %v897, 2147483648
    %v911 = vor.u32 1.1754944e-38, %v910
    %v912 = vsel %vm909, %v911, %v907
    %v913 = vmul.f32 1.0, %v912
    %v914 = vrcp.pop %v898
    %v915 = vmul.f32 %v898, %v914
    %v916 = vsub.f32 1.0, %v915
    %v917 = vmul.f32 %v914, %v916
    %v918 = vadd.f32 %v914, %v917
    %vm919 = vweird.f32 %v898
    %vm920 = vweird.f32 %v914
    %vm921 = vmor %vm919, %vm920
    %v922 = vsel %vm921, %v914, %v918
    %v923 = vand.u32 2147483647, %v898
    %vm924 = vcmp.eq.f32.partialorder %v923, 8.507059e+37
    %v925 = vand.u32 %v898, 2147483648
    %v926 = vor.u32 1.1754944e-38, %v925
    %v927 = vsel %vm924, %v926, %v922
    %v928 = vmul.f32 1.0, %v927
    %929 = vrot.lane.b32.xlu0 %v913, 64
    %v930 = vpop.permute.xlu0 %929
    %931 = vrot.lane.b32.xlu0 %v928, 64
    %v932 = vpop.permute.xlu0 %931
    %933 = vrot.lane.b32.xlu0 %v889, 96
    %v934 = vpop.permute.xlu0 %933
    %935 = vrot.lane.b32.xlu0 %v890, 96
    %v936 = vpop.permute.xlu0 %935
    %v937 = vmul.f32 %v930, %v934
    %v938 = vmul.f32 %v932, %v936
    %v939 = vadd.f32 %v889, %v937
    %v940 = vadd.f32 %v890, %v938
    %v941 = vtanh.pop %v939
    %v942 = vtanh.pop %v940
    %v943 = vsub.f32 1.0, %v913
    %v944 = vsub.f32 1.0, %v928
    %947 = vrot.lane.b32.xlu0 %v941, 96
    %v948 = vpop.permute.xlu0 %947
    %949 = vrot.lane.b32.xlu0 %v942, 96
    %v950 = vpop.permute.xlu0 %949
    %v953 = vmul.f32 %v943, %v948
    %v954 = vmul.f32 %v944, %v950
    %v955 = vmul.f32 %v913, %v854
    %v956 = vmul.f32 %v928, %v855
    %v957 = vadd.f32 %v953, %v955
    %v958 = vadd.f32 %v954, %v956
    %961 = vrot.lane.b32.xlu0 %v957, 96
    %v962 = vpop.permute.xlu0 %961
    %963 = vrot.lane.b32.xlu0 %v958, 96
    %v964 = vpop.permute.xlu0 %963
    %v965 = vsel %vm244, %v962, 0
    %v967 = vsel %vm244, %v964, 0
    %969 = vmatpush.msra.mxu0 0.0
    %970 = vmatpush.msra.mxu0 0.0
    %971 = vmatpush.msra.mxu0 0.0
    %972 = vmatpush.msra.mxu0 0.0
    %973 = vmatpush.msra.mxu0 0.0
    %974 = vmatpush.msra.mxu0 0.0
    %975 = vmatpush.msra.mxu0 0.0
    %976 = vmatpush.msra.mxu0 0.0
    %977 = vmatpush.msra.mxu0 0.0
    %978 = vmatpush.msra.mxu0 0.0
    %979 = vmatpush.msra.mxu0 0.0
    %980 = vmatpush.msra.mxu0 0.0
    %981 = vmatpush.msra.mxu0 %v243
    %982 = vmatpush.msra.mxu0 %v242
    %983 = vmatpush.msra.mxu0 %v241
    %984 = vmatpush.msra.mxu0 %v240
    %985 = vmatmul.f32.gmra.mxu0 %v965
    %v986 = vpop.f32.mrf.mxu0
    %v987 = vadd.f32 0.0, %v986
    %988 = vmatmul.f32.gmra.mxu0 %v967
    %v989 = vpop.f32.mrf.mxu0
    %v990 = vadd.f32 0.0, %v989
    %991 = vdwg.mxu0
    %v992 = vadd.f32 %v235, %v987
    %v993 = vadd.f32 %v238, %v990
    %v994 = vxor.u32 %v992, 2147483648
    %v995 = vxor.u32 %v993, 2147483648
    %v996 = vmul.f32 %v994, 1.442695
    %v997 = vpow.pop %v996
    %v998 = vmul.f32 %v995, 1.442695
    %v999 = vpow.pop %v998
    %v1000 = vadd.f32 %v997, 1.0
    %v1001 = vadd.f32 %v999, 1.0
    %v1002 = vrcp.pop %v1000
    %v1003 = vmul.f32 %v1000, %v1002
    %v1004 = vsub.f32 1.0, %v1003
    %v1005 = vmul.f32 %v1002, %v1004
    %v1006 = vadd.f32 %v1002, %v1005
    %vm1007 = vweird.f32 %v1000
    %vm1008 = vweird.f32 %v1002
    %vm1009 = vmor %vm1007, %vm1008
    %v1010 = vsel %vm1009, %v1002, %v1006
    %v1011 = vand.u32 2147483647, %v1000
    %vm1012 = vcmp.eq.f32.partialorder %v1011, 8.507059e+37
    %v1013 = vand.u32 %v1000, 2147483648
    %v1014 = vor.u32 1.1754944e-38, %v1013
    %v1015 = vsel %vm1012, %v1014, %v1010
    %v1016 = vmul.f32 1.0, %v1015
    %v1017 = vrcp.pop %v1001
    %v1018 = vmul.f32 %v1001, %v1017
    %v1019 = vsub.f32 1.0, %v1018
    %v1020 = vmul.f32 %v1017, %v1019
    %v1021 = vadd.f32 %v1017, %v1020
    %vm1022 = vweird.f32 %v1001
    %vm1023 = vweird.f32 %v1017
    %vm1024 = vmor %vm1022, %vm1023
    %v1025 = vsel %vm1024, %v1017, %v1021
    %v1026 = vand.u32 2147483647, %v1001
    %vm1027 = vcmp.eq.f32.partialorder %v1026, 8.507059e+37
    %v1028 = vand.u32 %v1001, 2147483648
    %v1029 = vor.u32 1.1754944e-38, %v1028
    %v1030 = vsel %vm1027, %v1029, %v1025
    %v1031 = vmul.f32 1.0, %v1030
    %1032 = vrot.lane.b32.xlu0 %v1016, 64
    %v1033 = vpop.permute.xlu0 %1032
    %1034 = vrot.lane.b32.xlu0 %v1031, 64
    %v1035 = vpop.permute.xlu0 %1034
    %1036 = vrot.lane.b32.xlu0 %v992, 96
    %v1037 = vpop.permute.xlu0 %1036
    %1038 = vrot.lane.b32.xlu0 %v993, 96
    %v1039 = vpop.permute.xlu0 %1038
    %v1040 = vmul.f32 %v1033, %v1037
    %v1041 = vmul.f32 %v1035, %v1039
    %v1042 = vadd.f32 %v992, %v1040
    %v1043 = vadd.f32 %v993, %v1041
    %v1044 = vtanh.pop %v1042
    %v1045 = vtanh.pop %v1043
    %v1046 = vsub.f32 1.0, %v1016
    %v1047 = vsub.f32 1.0, %v1031
    %1050 = vrot.lane.b32.xlu0 %v1044, 96
    %v1051 = vpop.permute.xlu0 %1050
    %1052 = vrot.lane.b32.xlu0 %v1045, 96
    %v1053 = vpop.permute.xlu0 %1052
    %v1056 = vmul.f32 %v1046, %v1051
    %v1057 = vmul.f32 %v1047, %v1053
    %v1058 = vmul.f32 %v1016, %v957
    %v1059 = vmul.f32 %v1031, %v958
    %v1060 = vadd.f32 %v1056, %v1058
    %v1061 = vadd.f32 %v1057, %v1059
    %v1062 = vld [vmem:[#allocation2] sm:$0xff]
    %v1063 = vld [vmem:[#allocation2 + $0x8] sm:$0xff]
    %v1064 = vld [vmem:[#allocation2 + $0x10] sm:$0xff]
    %v1065 = vld [vmem:[#allocation2 + $0x18] sm:$0xff]
    %v1066 = vld [vmem:[#allocation2 + $0x20] sm:$0xff]
    %v1067 = vld [vmem:[#allocation2 + $0x28] sm:$0xff]
    %v1068 = vld [vmem:[#allocation2 + $0x30] sm:$0xff]
    %v1069 = vld [vmem:[#allocation2 + $0x38] sm:$0xff]
    %v1070 = vld [vmem:[#allocation2 + $0x40] sm:$0xff]
    %v1071 = vld [vmem:[#allocation2 + $0x48] sm:$0xff]
    %v1072 = vld [vmem:[#allocation2 + $0x50] sm:$0xff]
    %v1073 = vld [vmem:[#allocation2 + $0x58] sm:$0xff]
    %1075 = vrot.lane.b32.xlu0 %v1061, 96
    %v1076 = vpop.permute.xlu0 %1075
    %v1077 = vsel %vm244, %v1076, 0
    %1079 = vmatpush.msra.mxu0 0.0
    %1080 = vmatpush.msra.mxu0 0.0
    %1081 = vmatpush.msra.mxu0 0.0
    %1082 = vmatpush.msra.mxu0 0.0
    %1083 = vmatpush.msra.mxu0 0.0
    %1084 = vmatpush.msra.mxu0 0.0
    %1085 = vmatpush.msra.mxu0 0.0
    %1086 = vmatpush.msra.mxu0 0.0
    %1087 = vmatpush.msra.mxu0 0.0
    %1088 = vmatpush.msra.mxu0 0.0
    %1089 = vmatpush.msra.mxu0 0.0
    %1090 = vmatpush.msra.mxu0 0.0
    %1091 = vmatpush.msra.mxu0 %v1069
    %1092 = vmatpush.msra.mxu0 %v1068
    %1093 = vmatpush.msra.mxu0 %v1067
    %1094 = vmatpush.msra.mxu0 %v1066
    %1095 = vmatmul.f32.gmra.mxu0 %v1077
    %v1096 = vpop.f32.mrf.mxu0
    %v1097 = vadd.f32 0.0, %v1096
    %1098 = vdwg.mxu0
    %1100 = vrot.lane.b32.xlu0 %v1060, 96
    %v1101 = vpop.permute.xlu0 %1100
    %v1102 = vsel %vm244, %v1101, 0
    %1104 = vmatpush.msra.mxu0 0.0
    %1105 = vmatpush.msra.mxu0 0.0
    %1106 = vmatpush.msra.mxu0 0.0
    %1107 = vmatpush.msra.mxu0 0.0
    %1108 = vmatpush.msra.mxu0 0.0
    %1109 = vmatpush.msra.mxu0 0.0
    %1110 = vmatpush.msra.mxu0 0.0
    %1111 = vmatpush.msra.mxu0 0.0
    %1112 = vmatpush.msra.mxu0 0.0
    %1113 = vmatpush.msra.mxu0 0.0
    %1114 = vmatpush.msra.mxu0 0.0
    %1115 = vmatpush.msra.mxu0 0.0
    %1116 = vmatpush.msra.mxu0 %v1065
    %1117 = vmatpush.msra.mxu0 %v1064
    %1118 = vmatpush.msra.mxu0 %v1063
    %1119 = vmatpush.msra.mxu0 %v1062
    %1120 = vmatmul.f32.gmra.mxu0 %v1102
    %v1121 = vpop.f32.mrf.mxu0
    %v1122 = vadd.f32 %v1097, %v1121
    %1123 = vdwg.mxu0
    %v1124 = vsub.f32 %v1060, %v1061
    %1126 = vrot.lane.b32.xlu0 %v1124, 96
    %v1127 = vpop.permute.xlu0 %1126
    %v1128 = vsel %vm244, %v1127, 0
    %1130 = vmatpush.msra.mxu0 0.0
    %1131 = vmatpush.msra.mxu0 0.0
    %1132 = vmatpush.msra.mxu0 0.0
    %1133 = vmatpush.msra.mxu0 0.0
    %1134 = vmatpush.msra.mxu0 0.0
    %1135 = vmatpush.msra.mxu0 0.0
    %1136 = vmatpush.msra.mxu0 0.0
    %1137 = vmatpush.msra.mxu0 0.0
    %1138 = vmatpush.msra.mxu0 0.0
    %1139 = vmatpush.msra.mxu0 0.0
    %1140 = vmatpush.msra.mxu0 0.0
    %1141 = vmatpush.msra.mxu0 0.0
    %1142 = vmatpush.msra.mxu0 %v1073
    %1143 = vmatpush.msra.mxu0 %v1072
    %1144 = vmatpush.msra.mxu0 %v1071
    %1145 = vmatpush.msra.mxu0 %v1070
    %1146 = vmatmul.f32.gmra.mxu0 %v1128
    %v1147 = vpop.f32.mrf.mxu0
    %v1148 = vadd.f32 0.0, %v1147
    %1149 = vdwg.mxu0
    %v1150 = vadd.f32 %v1122, %v1148
    %v1151 = vld [vmem:[%s5] sm:$0x1]
    %v1153 = vperm.slane %v1151, 0
    %v1155 = vadd.f32 %v1150, %v1153
    %1156 = vst [vmem:[%s6] sm:$0xff] %v1155
    %1157 = vmax.xlane.f32.xlu0 %v1155
    %v1158 = vpop.xlane.xlu0 %1157
    %vm1159 = vcmp.eq.f32.partialorder %v1155, %v1158
    %v1160 = vsel %vm1159, %v58, 128
    %v1161 = vand.u32 %v1160, 65535
    %v1162 = vshra.s32 %v1160, 16
    %v1163 = vcvt.s32.f32 %v1161
    %v1164 = vcvt.s32.f32 %v1162
    %1165 = vmin.xlane.f32.xlu0 %v1164
    %v1166 = vpop.xlane.xlu0 %1165
    %vm1167 = vcmp.eq.f32.partialorder %v1164, %v1166
    %v1168 = vsel %vm1167, %v1163, inf
    %1169 = vmin.xlane.f32.xlu0 %v1168
    %v1170 = vpop.xlane.xlu0 %1169
    %v1171 = vcvt.f32.s32 %v1170
    %v1172 = vcvt.f32.s32 %v1166
    %v1173 = vshll.u32 %v1172, 16
    %v1174 = vadd.s32 %v1173, %v1171
    %vm1175 = vcmask 7168
    %1176 = vst.msk [vmem:[%s7] sm:$0xff] %vm1175, %v1174
    // Predicated region
    $region30: #{relation_classifier_forward.1} parent=1 // pred_check
      _
    $region31: #{relation_classifier_forward.1} parent=1 // pred_check_branch
      %1178 = sbr.rel (0) target = $region33
    $region32: #{relation_classifier_forward.1} parent=1 // pred_region
      _
    $region33: #{relation_classifier_forward.1} parent=1 // pred_fallthru
      _
    // Predicated region
    $region34: #{relation_classifier_forward.1} parent=1 // pred_check
      _
    $region35: #{relation_classifier_forward.1} parent=1 // pred_check_branch
      %1180 = sbr.rel (0) target = $region37
    $region36: #{relation_classifier_forward.1} parent=1 // pred_region
      _
    $region37: #{relation_classifier_forward.1} parent=1 // pred_fallthru
      _
    // Predicated region
    $region38: #{relation_classifier_forward.1} parent=1 // pred_check
      _
    $region39: #{relation_classifier_forward.1} parent=1 // pred_check_branch
      %1182 = sbr.rel (0) target = $region41
    $region40: #{relation_classifier_forward.1} parent=1 // pred_region
      _
    $region41: #{relation_classifier_forward.1} parent=1 // pred_fallthru
      _
    // Predicated region
    $region42: #{relation_classifier_forward.1} parent=1 // pred_check
      _
    $region43: #{relation_classifier_forward.1} parent=1 // pred_check_branch
      %1184 = sbr.rel (0) target = $region45
    $region44: #{relation_classifier_forward.1} parent=1 // pred_region
      _
    $region45: #{relation_classifier_forward.1} parent=1 // pred_fallthru
      _
    %1185 = vsyncpa [#allocation3], 1

</llo_original>
